<compile_context>
chip_gen: v7x
topology: tpu7x:2x2x1
jax: 0.10.0
libtpu: 0.0.40
codegen_flags: <defaults>
</compile_context>

<pallas_src>
import functools

import jax
import jax.numpy as jnp
from jax.experimental import pallas as pl
from jax.experimental.pallas import tpu as pltpu


def _layer_norm(y, gamma, beta, eps=1e-6):
    mean = jnp.mean(y, axis=-1, keepdims=True)
    cent = y - mean
    var = jnp.mean(cent * cent, axis=-1, keepdims=True)
    return cent * jax.lax.rsqrt(var + eps) * gamma + beta


def _vmem_limit_bytes():
    """Generation-aware VMEM request (~3/4 of per-core capacity, capped at 100 MiB).

    v5e/v6e: 128 MiB per TensorCore -> request 96 MiB; v7x: 64 MiB -> request 48 MiB,
    leaving headroom for compiler scratch / double buffers.
    """
    try:
        cap = getattr(pltpu.get_tpu_info(), "vmem_capacity_bytes", None)
        if cap:
            return int(min((cap * 3) // 4, 100 * 1024 * 1024))
    except Exception:
        pass
    return 48 * 1024 * 1024  # conservative fallback that fits every generation


# ---------------------------------------------------------------------------
# Fused SlfAttnLayer kernel: one grid step per batch element.
# ---------------------------------------------------------------------------
def _slf_attn_layer_kernel(*refs, n_head, d_k, d_v, inv_scale, has_mask, return_attn):
    it = iter(refs)
    x_ref = next(it)                                   # (1, L, D)
    mask_ref = next(it) if has_mask else None          # (1, L, L) int32 (optional)
    wqkv_ref = next(it)                                # (D, 2*HK+HV) bf16, [Wq | Wk | Wv]
    wfc_ref = next(it)                                 # (HV, D) bf16
    ga_ref = next(it)                                  # (1, D) LN gamma (attention)
    ba_ref = next(it)                                  # (1, D) LN beta  (attention)
    w1_ref = next(it)                                  # (D, d_inner) bf16
    b1_ref = next(it)                                  # (1, d_inner)
    w2_ref = next(it)                                  # (d_inner, D) bf16
    b2_ref = next(it)                                  # (1, D)
    gf_ref = next(it)                                  # (1, D) LN gamma (FFN)
    bf_ref = next(it)                                  # (1, D) LN beta  (FFN)
    o_ref = next(it)                                   # (1, L, D) output
    attn_ref = next(it) if return_attn else None       # (1, H, L, L) optional output
    ctx_ref = next(it)                                 # VMEM scratch (L, HV) f32

    HK = n_head * d_k

    xv = x_ref[0]                                      # (L, D)
    x_f32 = xv.astype(jnp.float32)                     # residual path stays f32
    xb = xv.astype(wqkv_ref.dtype)                     # bf16 MXU input

    # ---- fused Q/K/V projection: single MXU pass over the concatenated weight ----
    qkv = jnp.dot(xb, wqkv_ref[...], preferred_element_type=jnp.float32)  # (L, 2HK+HV)
    q = qkv[:, :HK] * inv_scale
    k = qkv[:, HK:2 * HK]
    v = qkv[:, 2 * HK:]

    mask2d = mask_ref[0] if has_mask else None         # (L, L)

    # ---- scaled dot-product attention, one head at a time (n_head small & static) ----
    # Each head's context is written straight into the VMEM ctx slab (no lane concat).
    for h in range(n_head):
        q_h = q[:, h * d_k:(h + 1) * d_k].astype(wqkv_ref.dtype)
        k_h = k[:, h * d_k:(h + 1) * d_k].astype(wqkv_ref.dtype)
        v_h = v[:, h * d_v:(h + 1) * d_v].astype(wqkv_ref.dtype)

        # scores = (q/scale) @ k^T, contracting the head dim (no explicit transpose).
        s = jax.lax.dot_general(q_h, k_h, (((1,), (1,)), ((), ())),
                                preferred_element_type=jnp.float32)       # (L, L)
        if has_mask:
            s = jnp.where(mask2d == 0, -1e9, s)

        m = jnp.max(s, axis=-1, keepdims=True)
        p = jnp.exp(s - m)
        denom = jnp.sum(p, axis=-1, keepdims=True)
        p = p * pl.reciprocal(denom, approx=True)       # EUP recip + VPU mul (no divide)
        # TODO(synk): attention dropout implemented as identity (inference / eval mode).

        if return_attn:
            attn_ref[0, h] = p.astype(attn_ref.dtype)

        ctx_ref[:, h * d_v:(h + 1) * d_v] = jnp.dot(
            p.astype(v_h.dtype), v_h, preferred_element_type=jnp.float32)  # (L, d_v)

    # ---- output projection + residual + LayerNorm (eps=1e-6) ----
    out = jnp.dot(ctx_ref[...].astype(wfc_ref.dtype), wfc_ref[...],
                  preferred_element_type=jnp.float32)                      # (L, D)
    # TODO(synk): post-fc dropout implemented as identity (inference / eval mode).
    out = out + x_f32
    out = _layer_norm(out, ga_ref[...], ba_ref[...])

    # ---- positionwise FFN + residual + LayerNorm, fused in the same kernel ----
    hid = jnp.dot(out.astype(w1_ref.dtype), w1_ref[...],
                  preferred_element_type=jnp.float32) + b1_ref[...]
    hid = jnp.maximum(hid, 0.0)
    y = jnp.dot(hid.astype(w2_ref.dtype), w2_ref[...],
                preferred_element_type=jnp.float32) + b2_ref[...]
    # TODO(synk): FFN dropout implemented as identity (inference / eval mode).
    y = y + out
    y = _layer_norm(y, gf_ref[...], bf_ref[...])

    o_ref[0] = y.astype(o_ref.dtype)


# ---------------------------------------------------------------------------
# Wrapper
# ---------------------------------------------------------------------------
def _as_row(a):
    a = jnp.asarray(a)
    return a.reshape(1, -1) if a.ndim == 1 else a


def slf_attn_layer(x, params, *, n_head, d_k, d_v, mask=None, return_attn=True,
                   mxu_dtype=jnp.bfloat16):
    """x: (B, L, d_model). Linear weights stored transposed (y = x @ W == x @ W_torch.T)."""
    (wq, wk, wv, wfc, g_attn, b_attn, w1, b1, w2, b2, g_ffn, b_ffn) = params
    B, L, D = x.shape
    HK = n_head * d_k
    HV = n_head * d_v
    d_inner = w1.shape[1]
    has_mask = mask is not None

    # One-time weight prep: fuse [Wq | Wk | Wv] and cast matmul weights to bf16.
    wqkv_c = jnp.concatenate([wq, wk, wv], axis=1).astype(mxu_dtype)  # (D, 2HK+HV)
    wfc_c = wfc.astype(mxu_dtype)
    w1_c = w1.astype(mxu_dtype)
    w2_c = w2.astype(mxu_dtype)
    g_attn, b_attn = _as_row(g_attn), _as_row(b_attn)
    b1, b2 = _as_row(b1), _as_row(b2)
    g_ffn, b_ffn = _as_row(g_ffn), _as_row(b_ffn)

    kernel = functools.partial(
        _slf_attn_layer_kernel, n_head=n_head, d_k=d_k, d_v=d_v,
        inv_scale=float(1.0 / (d_k ** 0.5)),
        has_mask=has_mask, return_attn=return_attn)

    def _const2d(shape):
        return pl.BlockSpec(shape, lambda b: (0, 0))   # constant index_map -> no re-DMA

    in_specs = [pl.BlockSpec((1, L, D), lambda b: (b, 0, 0))]          # x (per batch)
    inputs = [x]
    if has_mask:
        m = jnp.asarray(mask)
        if m.ndim == 2:
            m = jnp.broadcast_to(m[None], (B, L, L))
        inputs.append(m.astype(jnp.int32))
        in_specs.append(pl.BlockSpec((1, L, L), lambda b: (b, 0, 0)))  # slf_attn_mask
    in_specs += [
        _const2d((D, 2 * HK + HV)),   # fused Wqkv
        _const2d((HV, D)),            # Wfc
        _const2d((1, D)),             # LN1 gamma
        _const2d((1, D)),             # LN1 beta
        _const2d((D, d_inner)),       # W1
        _const2d((1, d_inner)),       # b1
        _const2d((d_inner, D)),       # W2
        _const2d((1, D)),             # b2
        _const2d((1, D)),             # LN2 gamma
        _const2d((1, D)),             # LN2 beta
    ]
    inputs += [wqkv_c, wfc_c, g_attn, b_attn, w1_c, b1, w2_c, b2, g_ffn, b_ffn]

    out_shapes = [jax.ShapeDtypeStruct((B, L, D), x.dtype)]
    out_specs = [pl.BlockSpec((1, L, D), lambda b: (b, 0, 0))]
    if return_attn:
        out_shapes.append(jax.ShapeDtypeStruct((B, n_head, L, L), jnp.float32))
        out_specs.append(pl.BlockSpec((1, n_head, L, L), lambda b: (b, 0, 0, 0)))

    flops_per_batch = (2 * L * D * (2 * HK + HV)                 # fused QKV projection
                       + 2 * n_head * L * L * (d_k + d_v)        # scores + context
                       + 2 * L * HV * D                          # output projection
                       + 4 * L * D * d_inner)                    # FFN matmuls
    bytes_accessed = (2 * B * L * D * x.dtype.itemsize
                      + (B * n_head * L * L * 4 if return_attn else 0)
                      + (B * L * L * 4 if has_mask else 0)
                      + 2 * (D * (2 * HK + HV) + HV * D + 2 * D * d_inner)
                      + 4 * (4 * D + d_inner))
    cost = pl.CostEstimate(flops=int(B * flops_per_batch),
                           transcendentals=int(B * n_head * L * (L + 1)),
                           bytes_accessed=int(bytes_accessed))

    res = pl.pallas_call(
        kernel,
        out_shape=tuple(out_shapes),
        grid_spec=pltpu.PrefetchScalarGridSpec(
            num_scalar_prefetch=0,
            grid=(B,),
            in_specs=in_specs,
            out_specs=out_specs,
            scratch_shapes=[pltpu.VMEM((L, HV), jnp.float32)]),   # per-batch ctx slab
        compiler_params=pltpu.CompilerParams(
            dimension_semantics=("parallel",),
            vmem_limit_bytes=_vmem_limit_bytes()),
        cost_estimate=cost,
    )(*inputs)

    if return_attn:
        enc_out, attn = res
    else:
        enc_out, attn = res[0], None
    return enc_out, attn


# ---------------------------------------------------------------------------
# Pure-JAX f32 reference (mirrors the PyTorch module in eval mode)
# ---------------------------------------------------------------------------
def _layer_norm_ref(y, g, b, eps=1e-6):
    mean = jnp.mean(y, axis=-1, keepdims=True)
    var = jnp.mean((y - mean) ** 2, axis=-1, keepdims=True)
    return (y - mean) * jax.lax.rsqrt(var + eps) * g + b


def _reference(x, params, *, n_head, d_k, d_v, mask=None):
    (wq, wk, wv, wfc, g_attn, b_attn, w1, b1, w2, b2, g_ffn, b_ffn) = params
    B, L, D = x.shape
    q = (x @ wq).reshape(B, L, n_head, d_k).transpose(0, 2, 1, 3)
    k = (x @ wk).reshape(B, L, n_head, d_k).transpose(0, 2, 1, 3)
    v = (x @ wv).reshape(B, L, n_head, d_v).transpose(0, 2, 1, 3)
    scores = jnp.einsum('bhqd,bhkd->bhqk', q / (d_k ** 0.5), k)
    if mask is not None:
        scores = jnp.where(mask[:, None, :, :] == 0, -1e9, scores)
    attn = jax.nn.softmax(scores, axis=-1)
    ctx = jnp.einsum('bhqk,bhkd->bhqd', attn, v)
    ctx = ctx.transpose(0, 2, 1, 3).reshape(B, L, n_head * d_v)
    o = ctx @ wfc + x
    o = _layer_norm_ref(o, g_attn, b_attn)
    h = jnp.maximum(o @ w1 + b1, 0.0)
    y = h @ w2 + b2 + o
    y = _layer_norm_ref(y, g_ffn, b_ffn)
    return y, attn


if __name__ == "__main__":
    # Small, lane-dense shapes consistent with SlfAttnLayer(d_model, d_inner, n_head, d_k, d_v)
    B, L = 2, 16
    d_model, d_inner = 128, 256
    n_head, d_k, d_v = 4, 32, 32

    key = jax.random.PRNGKey(0)
    ks = jax.random.split(key, 13)

    x = jax.random.normal(ks[0], (B, L, d_model), dtype=jnp.float32)

    # Linear weights stored transposed (w == W.T so that y = x @ w == x @ W.T).
    wq = jax.random.normal(ks[1], (d_model, n_head * d_k), dtype=jnp.float32) * 0.1
    wk = jax.random.normal(ks[2], (d_model, n_head * d_k), dtype=jnp.float32) * 0.1
    wv = jax.random.normal(ks[3], (d_model, n_head * d_v), dtype=jnp.float32) * 0.1
    wfc = jax.random.normal(ks[4], (n_head * d_v, d_model), dtype=jnp.float32) * 0.1
    g_attn = 1.0 + 0.1 * jax.random.normal(ks[5], (1, d_model), dtype=jnp.float32)
    b_attn = 0.1 * jax.random.normal(ks[6], (1, d_model), dtype=jnp.float32)
    w1 = jax.random.normal(ks[7], (d_model, d_inner), dtype=jnp.float32) * 0.1
    b1 = 0.1 * jax.random.normal(ks[8], (1, d_inner), dtype=jnp.float32)
    w2 = jax.random.normal(ks[9], (d_inner, d_model), dtype=jnp.float32) * 0.1
    b2 = 0.1 * jax.random.normal(ks[10], (1, d_model), dtype=jnp.float32)
    g_ffn = 1.0 + 0.1 * jax.random.normal(ks[11], (1, d_model), dtype=jnp.float32)
    b_ffn = 0.1 * jax.random.normal(ks[12], (1, d_model), dtype=jnp.float32)

    params = (wq, wk, wv, wfc, g_attn, b_attn, w1, b1, w2, b2, g_ffn, b_ffn)

    # 1) unmasked, returning attention probabilities (matches module forward exactly)
    out, attn = slf_attn_layer(x, params, n_head=n_head, d_k=d_k, d_v=d_v)
    out, attn = jax.block_until_ready((out, attn))
    ref_out, ref_attn = _reference(x, params, n_head=n_head, d_k=d_k, d_v=d_v)
    assert out.shape == (B, L, d_model)
    assert attn.shape == (B, n_head, L, L)
    # Kernel runs its matmuls with bf16 MXU inputs (f32 accumulation) and an approx
    # reciprocal in the softmax; compare against the full-f32 reference with relaxed tol.
    assert jnp.allclose(attn, ref_attn, atol=2e-2, rtol=2e-2), "attn mismatch vs reference"
    assert jnp.allclose(out, ref_out, atol=5e-2, rtol=5e-2), "output mismatch vs reference"

    # 2) masked path (slf_attn_mask): causal mask, validated against the reference
    mask = jnp.broadcast_to(jnp.tril(jnp.ones((L, L), jnp.int32))[None], (B, L, L))
    out_m, attn_m = slf_attn_layer(x, params, n_head=n_head, d_k=d_k, d_v=d_v, mask=mask)
    out_m, attn_m = jax.block_until_ready((out_m, attn_m))
    ref_out_m, ref_attn_m = _reference(x, params, n_head=n_head, d_k=d_k, d_v=d_v, mask=mask)
    assert jnp.allclose(attn_m, ref_attn_m, atol=2e-2, rtol=2e-2), "masked attn mismatch"
    assert jnp.allclose(out_m, ref_out_m, atol=5e-2, rtol=5e-2), "masked output mismatch"

    # 3) attention-probs output skipped (drops the lane-narrow (B,H,L,L) HBM write entirely)
    out_na, attn_na = slf_attn_layer(x, params, n_head=n_head, d_k=d_k, d_v=d_v,
                                     return_attn=False)
    out_na = jax.block_until_ready(out_na)
    assert attn_na is None
    assert jnp.allclose(out_na, ref_out, atol=5e-2, rtol=5e-2), "no-attn output mismatch"

    print("KERNEL_OK")
</pallas_src>

<mosaic_0001>
module attributes {stable_mosaic.version = 11 : i64} {
  func.func @_slf_attn_layer_kernel(%arg0: i32, %arg1: memref<1x16x128xf32, #tpu.memory_space<vmem>>, %arg2: memref<128x384xbf16, #tpu.memory_space<vmem>>, %arg3: memref<128x128xbf16, #tpu.memory_space<vmem>>, %arg4: memref<1x128xf32, #tpu.memory_space<vmem>>, %arg5: memref<1x128xf32, #tpu.memory_space<vmem>>, %arg6: memref<128x256xbf16, #tpu.memory_space<vmem>>, %arg7: memref<1x256xf32, #tpu.memory_space<vmem>>, %arg8: memref<256x128xbf16, #tpu.memory_space<vmem>>, %arg9: memref<1x128xf32, #tpu.memory_space<vmem>>, %arg10: memref<1x128xf32, #tpu.memory_space<vmem>>, %arg11: memref<1x128xf32, #tpu.memory_space<vmem>>, %arg12: memref<1x16x128xf32, #tpu.memory_space<vmem>>, %arg13: memref<1x4x16x16xf32, #tpu.memory_space<vmem>>, %arg14: memref<16x128xf32, #tpu.memory_space<vmem>>) attributes {dimension_semantics = [#tpu.dimension_semantics<parallel>], iteration_bounds = array<i64: 2>, scalar_prefetch = 0 : i64, scratch_operands = 1 : i64, tpu.core_type = #tpu.core_type<tc>, window_params = [{transform_indices = @transform_0, window_bounds = array<i64: 1, 16, 128>}, {pipeline_mode = #tpu.pipeline_mode<synchronous>, transform_indices = @transform_1, window_bounds = array<i64: 128, 384>}, {pipeline_mode = #tpu.pipeline_mode<synchronous>, transform_indices = @transform_2, window_bounds = array<i64: 128, 128>}, {pipeline_mode = #tpu.pipeline_mode<synchronous>, transform_indices = @transform_3, window_bounds = array<i64: 1, 128>}, {pipeline_mode = #tpu.pipeline_mode<synchronous>, transform_indices = @transform_4, window_bounds = array<i64: 1, 128>}, {pipeline_mode = #tpu.pipeline_mode<synchronous>, transform_indices = @transform_5, window_bounds = array<i64: 128, 256>}, {pipeline_mode = #tpu.pipeline_mode<synchronous>, transform_indices = @transform_6, window_bounds = array<i64: 1, 256>}, {pipeline_mode = #tpu.pipeline_mode<synchronous>, transform_indices = @transform_7, window_bounds = array<i64: 256, 128>}, {pipeline_mode = #tpu.pipeline_mode<synchronous>, transform_indices = @transform_8, window_bounds = array<i64: 1, 128>}, {pipeline_mode = #tpu.pipeline_mode<synchronous>, transform_indices = @transform_9, window_bounds = array<i64: 1, 128>}, {pipeline_mode = #tpu.pipeline_mode<synchronous>, transform_indices = @transform_10, window_bounds = array<i64: 1, 128>}, {transform_indices = @transform_11, window_bounds = array<i64: 1, 16, 128>}, {transform_indices = @transform_12, window_bounds = array<i64: 1, 4, 16, 16>}]} {
    %c0 = arith.constant 0 : index
    %c0_0 = arith.constant 0 : index
    %c0_1 = arith.constant 0 : index
    %0 = vector.load %arg1[%c0, %c0_0, %c0_1] : memref<1x16x128xf32, #tpu.memory_space<vmem>>, vector<1x16x128xf32>
    %1 = vector.shape_cast %0 : vector<1x16x128xf32> to vector<16x128xf32>
    %2 = arith.truncf %1 : vector<16x128xf32> to vector<16x128xbf16>
    %c0_2 = arith.constant 0 : index
    %c0_3 = arith.constant 0 : index
    %3 = vector.load %arg2[%c0_2, %c0_3] : memref<128x384xbf16, #tpu.memory_space<vmem>>, vector<128x384xbf16>
    %cst = arith.constant dense<0.000000e+00> : vector<16x384xf32>
    %4 = tpu.matmul %2, %3, %cst {dimension_numbers = #tpu.dot_dimension_numbers<[1], [0], [0], [1], [0, 0, 1, 1], [], []>} : vector<16x128xbf16>, vector<128x384xbf16>, vector<16x384xf32> -> vector<16x384xf32>
    %5 = vector.extract_strided_slice %4 {offsets = [0, 0], sizes = [16, 128], strides = [1, 1]} : vector<16x384xf32> to vector<16x128xf32>
    %cst_4 = arith.constant 0.176776692 : f32
    %6 = vector.broadcast %cst_4 : f32 to vector<16x128xf32>
    %7 = arith.mulf %5, %6 : vector<16x128xf32>
    %8 = vector.extract_strided_slice %4 {offsets = [0, 128], sizes = [16, 128], strides = [1, 1]} : vector<16x384xf32> to vector<16x128xf32>
    %9 = vector.extract_strided_slice %4 {offsets = [0, 256], sizes = [16, 128], strides = [1, 1]} : vector<16x384xf32> to vector<16x128xf32>
    %10 = vector.extract_strided_slice %7 {offsets = [0, 0], sizes = [16, 32], strides = [1, 1]} : vector<16x128xf32> to vector<16x32xf32>
    %11 = arith.truncf %10 : vector<16x32xf32> to vector<16x32xbf16>
    %12 = vector.extract_strided_slice %8 {offsets = [0, 0], sizes = [16, 32], strides = [1, 1]} : vector<16x128xf32> to vector<16x32xf32>
    %13 = arith.truncf %12 : vector<16x32xf32> to vector<16x32xbf16>
    %14 = vector.extract_strided_slice %9 {offsets = [0, 0], sizes = [16, 32], strides = [1, 1]} : vector<16x128xf32> to vector<16x32xf32>
    %15 = arith.truncf %14 : vector<16x32xf32> to vector<16x32xbf16>
    %cst_5 = arith.constant dense<0.000000e+00> : vector<16x16xf32>
    %16 = tpu.matmul %11, %13, %cst_5 {dimension_numbers = #tpu.dot_dimension_numbers<[1], [1], [0], [0], [0, 0, 1, 0], [], []>} : vector<16x32xbf16>, vector<16x32xbf16>, vector<16x16xf32> -> vector<16x16xf32>
    %cst_6 = arith.constant dense<0xFF800000> : vector<16xf32>
    %17 = vector.multi_reduction <maximumf>, %16, %cst_6 [1] : vector<16x16xf32> to vector<16xf32>
    %18 = vector.shape_cast %17 : vector<16xf32> to vector<16x1xf32>
    %19 = vector.broadcast %18 : vector<16x1xf32> to vector<16x16xf32>
    %20 = arith.subf %16, %19 : vector<16x16xf32>
    %21 = math.exp %20 : vector<16x16xf32>
    %cst_7 = arith.constant dense<0.000000e+00> : vector<16xf32>
    %22 = vector.multi_reduction <add>, %21, %cst_7 [1] : vector<16x16xf32> to vector<16xf32>
    %23 = vector.shape_cast %22 : vector<16xf32> to vector<16x1xf32>
    %24 = tpu.reciprocal %23 {approx = true} : vector<16x1xf32> -> vector<16x1xf32>
    %25 = vector.broadcast %24 : vector<16x1xf32> to vector<16x16xf32>
    %26 = arith.mulf %21, %25 : vector<16x16xf32>
    %c0_8 = arith.constant 0 : index
    %c0_9 = arith.constant 0 : index
    %c0_10 = arith.constant 0 : index
    %c0_11 = arith.constant 0 : index
    %27 = vector.load %arg13[%c0_8, %c0_9, %c0_10, %c0_11] : memref<1x4x16x16xf32, #tpu.memory_space<vmem>>, vector<1x1x16x16xf32>
    %28 = vector.shape_cast %27 : vector<1x1x16x16xf32> to vector<16x16xf32>
    %29 = vector.shape_cast %26 : vector<16x16xf32> to vector<1x1x16x16xf32>
    tpu.vector_store %arg13[%c0_8, %c0_9, %c0_10, %c0_11], %29 {strides = array<i32>} : memref<1x4x16x16xf32, #tpu.memory_space<vmem>>, vector<1x1x16x16xf32>,
    %30 = arith.truncf %26 : vector<16x16xf32> to vector<16x16xbf16>
    %cst_12 = arith.constant dense<0.000000e+00> : vector<16x32xf32>
    %31 = tpu.matmul %30, %15, %cst_12 {dimension_numbers = #tpu.dot_dimension_numbers<[1], [0], [0], [1], [0, 0, 1, 1], [], []>} : vector<16x16xbf16>, vector<16x32xbf16>, vector<16x32xf32> -> vector<16x32xf32>
    %c0_13 = arith.constant 0 : index
    %c0_14 = arith.constant 0 : index
    %32 = vector.load %arg14[%c0_13, %c0_14] : memref<16x128xf32, #tpu.memory_space<vmem>>, vector<16x32xf32>
    tpu.vector_store %arg14[%c0_13, %c0_14], %31 {strides = array<i32>} : memref<16x128xf32, #tpu.memory_space<vmem>>, vector<16x32xf32>,
    %33 = vector.extract_strided_slice %7 {offsets = [0, 32], sizes = [16, 32], strides = [1, 1]} : vector<16x128xf32> to vector<16x32xf32>
    %34 = arith.truncf %33 : vector<16x32xf32> to vector<16x32xbf16>
    %35 = vector.extract_strided_slice %8 {offsets = [0, 32], sizes = [16, 32], strides = [1, 1]} : vector<16x128xf32> to vector<16x32xf32>
    %36 = arith.truncf %35 : vector<16x32xf32> to vector<16x32xbf16>
    %37 = vector.extract_strided_slice %9 {offsets = [0, 32], sizes = [16, 32], strides = [1, 1]} : vector<16x128xf32> to vector<16x32xf32>
    %38 = arith.truncf %37 : vector<16x32xf32> to vector<16x32xbf16>
    %cst_15 = arith.constant dense<0.000000e+00> : vector<16x16xf32>
    %39 = tpu.matmul %34, %36, %cst_15 {dimension_numbers = #tpu.dot_dimension_numbers<[1], [1], [0], [0], [0, 0, 1, 0], [], []>} : vector<16x32xbf16>, vector<16x32xbf16>, vector<16x16xf32> -> vector<16x16xf32>
    %cst_16 = arith.constant dense<0xFF800000> : vector<16xf32>
    %40 = vector.multi_reduction <maximumf>, %39, %cst_16 [1] : vector<16x16xf32> to vector<16xf32>
    %41 = vector.shape_cast %40 : vector<16xf32> to vector<16x1xf32>
    %42 = vector.broadcast %41 : vector<16x1xf32> to vector<16x16xf32>
    %43 = arith.subf %39, %42 : vector<16x16xf32>
    %44 = math.exp %43 : vector<16x16xf32>
    %cst_17 = arith.constant dense<0.000000e+00> : vector<16xf32>
    %45 = vector.multi_reduction <add>, %44, %cst_17 [1] : vector<16x16xf32> to vector<16xf32>
    %46 = vector.shape_cast %45 : vector<16xf32> to vector<16x1xf32>
    %47 = tpu.reciprocal %46 {approx = true} : vector<16x1xf32> -> vector<16x1xf32>
    %48 = vector.broadcast %47 : vector<16x1xf32> to vector<16x16xf32>
    %49 = arith.mulf %44, %48 : vector<16x16xf32>
    %c0_18 = arith.constant 0 : index
    %c1 = arith.constant 1 : index
    %c0_19 = arith.constant 0 : index
    %c0_20 = arith.constant 0 : index
    %50 = vector.load %arg13[%c0_18, %c1, %c0_19, %c0_20] : memref<1x4x16x16xf32, #tpu.memory_space<vmem>>, vector<1x1x16x16xf32>
    %51 = vector.shape_cast %50 : vector<1x1x16x16xf32> to vector<16x16xf32>
    %52 = vector.shape_cast %49 : vector<16x16xf32> to vector<1x1x16x16xf32>
    tpu.vector_store %arg13[%c0_18, %c1, %c0_19, %c0_20], %52 {strides = array<i32>} : memref<1x4x16x16xf32, #tpu.memory_space<vmem>>, vector<1x1x16x16xf32>,
    %53 = arith.truncf %49 : vector<16x16xf32> to vector<16x16xbf16>
    %cst_21 = arith.constant dense<0.000000e+00> : vector<16x32xf32>
    %54 = tpu.matmul %53, %38, %cst_21 {dimension_numbers = #tpu.dot_dimension_numbers<[1], [0], [0], [1], [0, 0, 1, 1], [], []>} : vector<16x16xbf16>, vector<16x32xbf16>, vector<16x32xf32> -> vector<16x32xf32>
    %c0_22 = arith.constant 0 : index
    %c32 = arith.constant 32 : index
    %55 = vector.load %arg14[%c0_22, %c32] : memref<16x128xf32, #tpu.memory_space<vmem>>, vector<16x32xf32>
    tpu.vector_store %arg14[%c0_22, %c32], %54 {strides = array<i32>} : memref<16x128xf32, #tpu.memory_space<vmem>>, vector<16x32xf32>,
    %56 = vector.extract_strided_slice %7 {offsets = [0, 64], sizes = [16, 32], strides = [1, 1]} : vector<16x128xf32> to vector<16x32xf32>
    %57 = arith.truncf %56 : vector<16x32xf32> to vector<16x32xbf16>
    %58 = vector.extract_strided_slice %8 {offsets = [0, 64], sizes = [16, 32], strides = [1, 1]} : vector<16x128xf32> to vector<16x32xf32>
    %59 = arith.truncf %58 : vector<16x32xf32> to vector<16x32xbf16>
    %60 = vector.extract_strided_slice %9 {offsets = [0, 64], sizes = [16, 32], strides = [1, 1]} : vector<16x128xf32> to vector<16x32xf32>
    %61 = arith.truncf %60 : vector<16x32xf32> to vector<16x32xbf16>
    %cst_23 = arith.constant dense<0.000000e+00> : vector<16x16xf32>
    %62 = tpu.matmul %57, %59, %cst_23 {dimension_numbers = #tpu.dot_dimension_numbers<[1], [1], [0], [0], [0, 0, 1, 0], [], []>} : vector<16x32xbf16>, vector<16x32xbf16>, vector<16x16xf32> -> vector<16x16xf32>
    %cst_24 = arith.constant dense<0xFF800000> : vector<16xf32>
    %63 = vector.multi_reduction <maximumf>, %62, %cst_24 [1] : vector<16x16xf32> to vector<16xf32>
    %64 = vector.shape_cast %63 : vector<16xf32> to vector<16x1xf32>
    %65 = vector.broadcast %64 : vector<16x1xf32> to vector<16x16xf32>
    %66 = arith.subf %62, %65 : vector<16x16xf32>
    %67 = math.exp %66 : vector<16x16xf32>
    %cst_25 = arith.constant dense<0.000000e+00> : vector<16xf32>
    %68 = vector.multi_reduction <add>, %67, %cst_25 [1] : vector<16x16xf32> to vector<16xf32>
    %69 = vector.shape_cast %68 : vector<16xf32> to vector<16x1xf32>
    %70 = tpu.reciprocal %69 {approx = true} : vector<16x1xf32> -> vector<16x1xf32>
    %71 = vector.broadcast %70 : vector<16x1xf32> to vector<16x16xf32>
    %72 = arith.mulf %67, %71 : vector<16x16xf32>
    %c0_26 = arith.constant 0 : index
    %c2 = arith.constant 2 : index
    %c0_27 = arith.constant 0 : index
    %c0_28 = arith.constant 0 : index
    %73 = vector.load %arg13[%c0_26, %c2, %c0_27, %c0_28] : memref<1x4x16x16xf32, #tpu.memory_space<vmem>>, vector<1x1x16x16xf32>
    %74 = vector.shape_cast %73 : vector<1x1x16x16xf32> to vector<16x16xf32>
    %75 = vector.shape_cast %72 : vector<16x16xf32> to vector<1x1x16x16xf32>
    tpu.vector_store %arg13[%c0_26, %c2, %c0_27, %c0_28], %75 {strides = array<i32>} : memref<1x4x16x16xf32, #tpu.memory_space<vmem>>, vector<1x1x16x16xf32>,
    %76 = arith.truncf %72 : vector<16x16xf32> to vector<16x16xbf16>
    %cst_29 = arith.constant dense<0.000000e+00> : vector<16x32xf32>
    %77 = tpu.matmul %76, %61, %cst_29 {dimension_numbers = #tpu.dot_dimension_numbers<[1], [0], [0], [1], [0, 0, 1, 1], [], []>} : vector<16x16xbf16>, vector<16x32xbf16>, vector<16x32xf32> -> vector<16x32xf32>
    %c0_30 = arith.constant 0 : index
    %c64 = arith.constant 64 : index
    %78 = vector.load %arg14[%c0_30, %c64] : memref<16x128xf32, #tpu.memory_space<vmem>>, vector<16x32xf32>
    tpu.vector_store %arg14[%c0_30, %c64], %77 {strides = array<i32>} : memref<16x128xf32, #tpu.memory_space<vmem>>, vector<16x32xf32>,
    %79 = vector.extract_strided_slice %7 {offsets = [0, 96], sizes = [16, 32], strides = [1, 1]} : vector<16x128xf32> to vector<16x32xf32>
    %80 = arith.truncf %79 : vector<16x32xf32> to vector<16x32xbf16>
    %81 = vector.extract_strided_slice %8 {offsets = [0, 96], sizes = [16, 32], strides = [1, 1]} : vector<16x128xf32> to vector<16x32xf32>
    %82 = arith.truncf %81 : vector<16x32xf32> to vector<16x32xbf16>
    %83 = vector.extract_strided_slice %9 {offsets = [0, 96], sizes = [16, 32], strides = [1, 1]} : vector<16x128xf32> to vector<16x32xf32>
    %84 = arith.truncf %83 : vector<16x32xf32> to vector<16x32xbf16>
    %cst_31 = arith.constant dense<0.000000e+00> : vector<16x16xf32>
    %85 = tpu.matmul %80, %82, %cst_31 {dimension_numbers = #tpu.dot_dimension_numbers<[1], [1], [0], [0], [0, 0, 1, 0], [], []>} : vector<16x32xbf16>, vector<16x32xbf16>, vector<16x16xf32> -> vector<16x16xf32>
    %cst_32 = arith.constant dense<0xFF800000> : vector<16xf32>
    %86 = vector.multi_reduction <maximumf>, %85, %cst_32 [1] : vector<16x16xf32> to vector<16xf32>
    %87 = vector.shape_cast %86 : vector<16xf32> to vector<16x1xf32>
    %88 = vector.broadcast %87 : vector<16x1xf32> to vector<16x16xf32>
    %89 = arith.subf %85, %88 : vector<16x16xf32>
    %90 = math.exp %89 : vector<16x16xf32>
    %cst_33 = arith.constant dense<0.000000e+00> : vector<16xf32>
    %91 = vector.multi_reduction <add>, %90, %cst_33 [1] : vector<16x16xf32> to vector<16xf32>
    %92 = vector.shape_cast %91 : vector<16xf32> to vector<16x1xf32>
    %93 = tpu.reciprocal %92 {approx = true} : vector<16x1xf32> -> vector<16x1xf32>
    %94 = vector.broadcast %93 : vector<16x1xf32> to vector<16x16xf32>
    %95 = arith.mulf %90, %94 : vector<16x16xf32>
    %c0_34 = arith.constant 0 : index
    %c3 = arith.constant 3 : index
    %c0_35 = arith.constant 0 : index
    %c0_36 = arith.constant 0 : index
    %96 = vector.load %arg13[%c0_34, %c3, %c0_35, %c0_36] : memref<1x4x16x16xf32, #tpu.memory_space<vmem>>, vector<1x1x16x16xf32>
    %97 = vector.shape_cast %96 : vector<1x1x16x16xf32> to vector<16x16xf32>
    %98 = vector.shape_cast %95 : vector<16x16xf32> to vector<1x1x16x16xf32>
    tpu.vector_store %arg13[%c0_34, %c3, %c0_35, %c0_36], %98 {strides = array<i32>} : memref<1x4x16x16xf32, #tpu.memory_space<vmem>>, vector<1x1x16x16xf32>,
    %99 = arith.truncf %95 : vector<16x16xf32> to vector<16x16xbf16>
    %cst_37 = arith.constant dense<0.000000e+00> : vector<16x32xf32>
    %100 = tpu.matmul %99, %84, %cst_37 {dimension_numbers = #tpu.dot_dimension_numbers<[1], [0], [0], [1], [0, 0, 1, 1], [], []>} : vector<16x16xbf16>, vector<16x32xbf16>, vector<16x32xf32> -> vector<16x32xf32>
    %c0_38 = arith.constant 0 : index
    %c96 = arith.constant 96 : index
    %101 = vector.load %arg14[%c0_38, %c96] : memref<16x128xf32, #tpu.memory_space<vmem>>, vector<16x32xf32>
    tpu.vector_store %arg14[%c0_38, %c96], %100 {strides = array<i32>} : memref<16x128xf32, #tpu.memory_space<vmem>>, vector<16x32xf32>,
    %c0_39 = arith.constant 0 : index
    %c0_40 = arith.constant 0 : index
    %102 = vector.load %arg14[%c0_39, %c0_40] : memref<16x128xf32, #tpu.memory_space<vmem>>, vector<16x128xf32>
    %103 = arith.truncf %102 : vector<16x128xf32> to vector<16x128xbf16>
    %c0_41 = arith.constant 0 : index
    %c0_42 = arith.constant 0 : index
    %104 = vector.load %arg3[%c0_41, %c0_42] : memref<128x128xbf16, #tpu.memory_space<vmem>>, vector<128x128xbf16>
    %cst_43 = arith.constant dense<0.000000e+00> : vector<16x128xf32>
    %105 = tpu.matmul %103, %104, %cst_43 {dimension_numbers = #tpu.dot_dimension_numbers<[1], [0], [0], [1], [0, 0, 1, 1], [], []>} : vector<16x128xbf16>, vector<128x128xbf16>, vector<16x128xf32> -> vector<16x128xf32>
    %106 = arith.addf %105, %1 : vector<16x128xf32>
    %c0_44 = arith.constant 0 : index
    %c0_45 = arith.constant 0 : index
    %107 = vector.load %arg4[%c0_44, %c0_45] : memref<1x128xf32, #tpu.memory_space<vmem>>, vector<1x128xf32>
    %c0_46 = arith.constant 0 : index
    %c0_47 = arith.constant 0 : index
    %108 = vector.load %arg5[%c0_46, %c0_47] : memref<1x128xf32, #tpu.memory_space<vmem>>, vector<1x128xf32>
    %cst_48 = arith.constant dense<0.000000e+00> : vector<16xf32>
    %109 = vector.multi_reduction <add>, %106, %cst_48 [1] : vector<16x128xf32> to vector<16xf32>
    %110 = vector.shape_cast %109 : vector<16xf32> to vector<16x1xf32>
    %cst_49 = arith.constant 1.280000e+02 : f32
    %111 = vector.broadcast %cst_49 : f32 to vector<16x1xf32>
    %112 = arith.divf %110, %111 : vector<16x1xf32>
    %113 = vector.broadcast %112 : vector<16x1xf32> to vector<16x128xf32>
    %114 = arith.subf %106, %113 : vector<16x128xf32>
    %115 = arith.mulf %114, %114 : vector<16x128xf32>
    %cst_50 = arith.constant dense<0.000000e+00> : vector<16xf32>
    %116 = vector.multi_reduction <add>, %115, %cst_50 [1] : vector<16x128xf32> to vector<16xf32>
    %117 = vector.shape_cast %116 : vector<16xf32> to vector<16x1xf32>
    %cst_51 = arith.constant 1.280000e+02 : f32
    %118 = vector.broadcast %cst_51 : f32 to vector<16x1xf32>
    %119 = arith.divf %117, %118 : vector<16x1xf32>
    %cst_52 = arith.constant 9.99999997E-7 : f32
    %120 = vector.broadcast %cst_52 : f32 to vector<16x1xf32>
    %121 = arith.addf %119, %120 : vector<16x1xf32>
    %122 = math.rsqrt %121 : vector<16x1xf32>
    %123 = vector.broadcast %122 : vector<16x1xf32> to vector<16x128xf32>
    %124 = arith.mulf %114, %123 : vector<16x128xf32>
    %125 = vector.broadcast %107 : vector<1x128xf32> to vector<16x128xf32>
    %126 = arith.mulf %124, %125 : vector<16x128xf32>
    %127 = vector.broadcast %108 : vector<1x128xf32> to vector<16x128xf32>
    %128 = arith.addf %126, %127 : vector<16x128xf32>
    %129 = arith.truncf %128 : vector<16x128xf32> to vector<16x128xbf16>
    %c0_53 = arith.constant 0 : index
    %c0_54 = arith.constant 0 : index
    %130 = vector.load %arg6[%c0_53, %c0_54] : memref<128x256xbf16, #tpu.memory_space<vmem>>, vector<128x256xbf16>
    %cst_55 = arith.constant dense<0.000000e+00> : vector<16x256xf32>
    %131 = tpu.matmul %129, %130, %cst_55 {dimension_numbers = #tpu.dot_dimension_numbers<[1], [0], [0], [1], [0, 0, 1, 1], [], []>} : vector<16x128xbf16>, vector<128x256xbf16>, vector<16x256xf32> -> vector<16x256xf32>
    %c0_56 = arith.constant 0 : index
    %c0_57 = arith.constant 0 : index
    %132 = vector.load %arg7[%c0_56, %c0_57] : memref<1x256xf32, #tpu.memory_space<vmem>>, vector<1x256xf32>
    %133 = vector.broadcast %132 : vector<1x256xf32> to vector<16x256xf32>
    %134 = arith.addf %131, %133 : vector<16x256xf32>
    %cst_58 = arith.constant 0.000000e+00 : f32
    %135 = vector.broadcast %cst_58 : f32 to vector<16x256xf32>
    %136 = arith.maximumf %134, %135 : vector<16x256xf32>
    %137 = arith.truncf %136 : vector<16x256xf32> to vector<16x256xbf16>
    %c0_59 = arith.constant 0 : index
    %c0_60 = arith.constant 0 : index
    %138 = vector.load %arg8[%c0_59, %c0_60] : memref<256x128xbf16, #tpu.memory_space<vmem>>, vector<256x128xbf16>
    %cst_61 = arith.constant dense<0.000000e+00> : vector<16x128xf32>
    %139 = tpu.matmul %137, %138, %cst_61 {dimension_numbers = #tpu.dot_dimension_numbers<[1], [0], [0], [1], [0, 0, 1, 1], [], []>} : vector<16x256xbf16>, vector<256x128xbf16>, vector<16x128xf32> -> vector<16x128xf32>
    %c0_62 = arith.constant 0 : index
    %c0_63 = arith.constant 0 : index
    %140 = vector.load %arg9[%c0_62, %c0_63] : memref<1x128xf32, #tpu.memory_space<vmem>>, vector<1x128xf32>
    %141 = vector.broadcast %140 : vector<1x128xf32> to vector<16x128xf32>
    %142 = arith.addf %139, %141 : vector<16x128xf32>
    %143 = arith.addf %142, %128 : vector<16x128xf32>
    %c0_64 = arith.constant 0 : index
    %c0_65 = arith.constant 0 : index
    %144 = vector.load %arg10[%c0_64, %c0_65] : memref<1x128xf32, #tpu.memory_space<vmem>>, vector<1x128xf32>
    %c0_66 = arith.constant 0 : index
    %c0_67 = arith.constant 0 : index
    %145 = vector.load %arg11[%c0_66, %c0_67] : memref<1x128xf32, #tpu.memory_space<vmem>>, vector<1x128xf32>
    %cst_68 = arith.constant dense<0.000000e+00> : vector<16xf32>
    %146 = vector.multi_reduction <add>, %143, %cst_68 [1] : vector<16x128xf32> to vector<16xf32>
    %147 = vector.shape_cast %146 : vector<16xf32> to vector<16x1xf32>
    %cst_69 = arith.constant 1.280000e+02 : f32
    %148 = vector.broadcast %cst_69 : f32 to vector<16x1xf32>
    %149 = arith.divf %147, %148 : vector<16x1xf32>
    %150 = vector.broadcast %149 : vector<16x1xf32> to vector<16x128xf32>
    %151 = arith.subf %143, %150 : vector<16x128xf32>
    %152 = arith.mulf %151, %151 : vector<16x128xf32>
    %cst_70 = arith.constant dense<0.000000e+00> : vector<16xf32>
    %153 = vector.multi_reduction <add>, %152, %cst_70 [1] : vector<16x128xf32> to vector<16xf32>
    %154 = vector.shape_cast %153 : vector<16xf32> to vector<16x1xf32>
    %cst_71 = arith.constant 1.280000e+02 : f32
    %155 = vector.broadcast %cst_71 : f32 to vector<16x1xf32>
    %156 = arith.divf %154, %155 : vector<16x1xf32>
    %cst_72 = arith.constant 9.99999997E-7 : f32
    %157 = vector.broadcast %cst_72 : f32 to vector<16x1xf32>
    %158 = arith.addf %156, %157 : vector<16x1xf32>
    %159 = math.rsqrt %158 : vector<16x1xf32>
    %160 = vector.broadcast %159 : vector<16x1xf32> to vector<16x128xf32>
    %161 = arith.mulf %151, %160 : vector<16x128xf32>
    %162 = vector.broadcast %144 : vector<1x128xf32> to vector<16x128xf32>
    %163 = arith.mulf %161, %162 : vector<16x128xf32>
    %164 = vector.broadcast %145 : vector<1x128xf32> to vector<16x128xf32>
    %165 = arith.addf %163, %164 : vector<16x128xf32>
    %c0_73 = arith.constant 0 : index
    %c0_74 = arith.constant 0 : index
    %c0_75 = arith.constant 0 : index
    %166 = vector.load %arg12[%c0_73, %c0_74, %c0_75] : memref<1x16x128xf32, #tpu.memory_space<vmem>>, vector<1x16x128xf32>
    %167 = vector.shape_cast %166 : vector<1x16x128xf32> to vector<16x128xf32>
    %168 = vector.shape_cast %165 : vector<16x128xf32> to vector<1x16x128xf32>
    tpu.vector_store %arg12[%c0_73, %c0_74, %c0_75], %168 {strides = array<i32>} : memref<1x16x128xf32, #tpu.memory_space<vmem>>, vector<1x16x128xf32>,
    return
  }
  func.func @transform_0(%arg0: i32) -> (i32, i32, i32) {
    %c0_i32 = arith.constant 0 : i32
    %c0_i32_0 = arith.constant 0 : i32
    %c0_i32_1 = arith.constant 0 : i32
    return %arg0, %c0_i32, %c0_i32_0 : i32, i32, i32
  }
  func.func @transform_1(%arg0: i32) -> (i32, i32) {
    %c0_i32 = arith.constant 0 : i32
    %c0_i32_0 = arith.constant 0 : i32
    %c0_i32_1 = arith.constant 0 : i32
    return %c0_i32, %c0_i32_0 : i32, i32
  }
  func.func @transform_2(%arg0: i32) -> (i32, i32) {
    %c0_i32 = arith.constant 0 : i32
    %c0_i32_0 = arith.constant 0 : i32
    %c0_i32_1 = arith.constant 0 : i32
    return %c0_i32, %c0_i32_0 : i32, i32
  }
  func.func @transform_3(%arg0: i32) -> (i32, i32) {
    %c0_i32 = arith.constant 0 : i32
    %c0_i32_0 = arith.constant 0 : i32
    %c0_i32_1 = arith.constant 0 : i32
    return %c0_i32, %c0_i32_0 : i32, i32
  }
  func.func @transform_4(%arg0: i32) -> (i32, i32) {
    %c0_i32 = arith.constant 0 : i32
    %c0_i32_0 = arith.constant 0 : i32
    %c0_i32_1 = arith.constant 0 : i32
    return %c0_i32, %c0_i32_0 : i32, i32
  }
  func.func @transform_5(%arg0: i32) -> (i32, i32) {
    %c0_i32 = arith.constant 0 : i32
    %c0_i32_0 = arith.constant 0 : i32
    %c0_i32_1 = arith.constant 0 : i32
    return %c0_i32, %c0_i32_0 : i32, i32
  }
  func.func @transform_6(%arg0: i32) -> (i32, i32) {
    %c0_i32 = arith.constant 0 : i32
    %c0_i32_0 = arith.constant 0 : i32
    %c0_i32_1 = arith.constant 0 : i32
    return %c0_i32, %c0_i32_0 : i32, i32
  }
  func.func @transform_7(%arg0: i32) -> (i32, i32) {
    %c0_i32 = arith.constant 0 : i32
    %c0_i32_0 = arith.constant 0 : i32
    %c0_i32_1 = arith.constant 0 : i32
    return %c0_i32, %c0_i32_0 : i32, i32
  }
  func.func @transform_8(%arg0: i32) -> (i32, i32) {
    %c0_i32 = arith.constant 0 : i32
    %c0_i32_0 = arith.constant 0 : i32
    %c0_i32_1 = arith.constant 0 : i32
    return %c0_i32, %c0_i32_0 : i32, i32
  }
  func.func @transform_9(%arg0: i32) -> (i32, i32) {
    %c0_i32 = arith.constant 0 : i32
    %c0_i32_0 = arith.constant 0 : i32
    %c0_i32_1 = arith.constant 0 : i32
    return %c0_i32, %c0_i32_0 : i32, i32
  }
  func.func @transform_10(%arg0: i32) -> (i32, i32) {
    %c0_i32 = arith.constant 0 : i32
    %c0_i32_0 = arith.constant 0 : i32
    %c0_i32_1 = arith.constant 0 : i32
    return %c0_i32, %c0_i32_0 : i32, i32
  }
  func.func @transform_11(%arg0: i32) -> (i32, i32, i32) {
    %c0_i32 = arith.constant 0 : i32
    %c0_i32_0 = arith.constant 0 : i32
    %c0_i32_1 = arith.constant 0 : i32
    return %arg0, %c0_i32, %c0_i32_0 : i32, i32, i32
  }
  func.func @transform_12(%arg0: i32) -> (i32, i32, i32, i32) {
    %c0_i32 = arith.constant 0 : i32
    %c0_i32_0 = arith.constant 0 : i32
    %c0_i32_1 = arith.constant 0 : i32
    %c0_i32_2 = arith.constant 0 : i32
    return %arg0, %c0_i32, %c0_i32_0, %c0_i32_1 : i32, i32, i32, i32
  }
}

</mosaic_0001>

<llo_original>
// kernel: tpu_custom_call.1
$region0: #{tpu_custom_call.1}
  #allocation0 [shape = 'u32[]', space=smem, size = 0x4, offset = 0x4, fixed_abs, tag = 'smem constant byte address 0x4 - core index']
  #allocation1 [shape = 'u32[144,128]{1,0:T(1,128)}', space=vmem, size = 0x12000, scoped, tag = 'internal scratch']
  #allocation2 [shape = 'f32[16,128]{1,0:T(8,128)}', space=vmem, size = 0x2000, scoped, tag = 'scratch operand']
  %s0 = inlined_call_operand.hbm [shape: f32[2,16,128], index: 0, kind: input, shape index: {}]
  %s1 = inlined_call_operand.hbm [shape: bf16[128,384], index: 1, kind: input, shape index: {}]
  %s2 = inlined_call_operand.hbm [shape: bf16[128,128], index: 2, kind: input, shape index: {}]
  %s3 = inlined_call_operand.vmem [shape: f32[1,128], index: 3, kind: input, shape index: {}]
  %s4 = inlined_call_operand.vmem [shape: f32[1,128], index: 4, kind: input, shape index: {}]
  %s5 = inlined_call_operand.hbm [shape: bf16[128,256], index: 5, kind: input, shape index: {}]
  %s6 = inlined_call_operand.vmem [shape: f32[1,256], index: 6, kind: input, shape index: {}]
  %s7 = inlined_call_operand.hbm [shape: bf16[256,128], index: 7, kind: input, shape index: {}]
  %s8 = inlined_call_operand.vmem [shape: f32[1,128], index: 8, kind: input, shape index: {}]
  %s9 = inlined_call_operand.vmem [shape: f32[1,128], index: 9, kind: input, shape index: {}]
  %s10 = inlined_call_operand.vmem [shape: f32[1,128], index: 10, kind: input, shape index: {}]
  %s11 = inlined_call_operand.hbm [shape: f32[2,16,128], index: 11, kind: output, shape index: {0}]
  %s12 = inlined_call_operand.hbm [shape: f32[2,4,16,16], index: 12, kind: output, shape index: {1}]
  %13 = xla_tuple %s11, %s12
  %s14 = sld [smem:[#allocation0]]
  $region105: #{tpu_custom_call.1} parent=0
    _
  %s16 = ssub.s32 1, %s14
  %s17 = scalar_select 0, %s16, %s14
  $region1: #{tpu_custom_call.1} parent=0
    #allocation3 [shape = 'u8[16384]{0}', space=vmem, size = 0x4000, scoped, tag = 'input window, operand 0']
    #allocation4 [shape = 's32[2]{0}', space=sflag, size = 0x8, scoped, tag = 'scoped memory for tpu_custom_call.1']
    #allocation5 [shape = 's32[2]{0}', space=sflag, size = 0x8, scoped, tag = 'scoped memory for tpu_custom_call.1']
    #allocation6 [shape = 'u8[98304]{0}', space=vmem, size = 0x18000, scoped, tag = 'input window, operand 1, single buffered']
    #allocation7 [shape = 's32[1]{0}', space=sflag, size = 0x4, scoped, tag = 'scoped memory for tpu_custom_call.1']
    #allocation8 [shape = 'u8[32768]{0}', space=vmem, size = 0x8000, scoped, tag = 'input window, operand 2, single buffered']
    #allocation9 [shape = 'u8[65536]{0}', space=vmem, size = 0x10000, scoped, tag = 'input window, operand 5, single buffered']
    #allocation10 [shape = 's32[1]{0}', space=sflag, size = 0x4, scoped, tag = 'scoped memory for tpu_custom_call.1']
    #allocation11 [shape = 'u8[65536]{0}', space=vmem, size = 0x10000, scoped, tag = 'input window, operand 7, single buffered']
    #allocation12 [shape = 'u8[16384]{0}', space=vmem, size = 0x4000, scoped, tag = 'output window, operand 0']
    #allocation13 [shape = 'u8[65536]{0}', space=vmem, size = 0x10000, scoped, tag = 'output window, operand 1']
    #allocation14 [shape = 's32[2]{0}', space=sflag, size = 0x8, scoped, tag = 'scoped memory for tpu_custom_call.1']
    %18 = vsyncpa [#allocation4], 0
    %s19 = scalar_lea.sflag [#allocation4], 1
    %20 = vsyncpa %s19, 0
    %21 = vsyncpa [#allocation7], 0
    %22 = vsyncpa [#allocation10], 0
    %23 = vsyncpa [#allocation5], 0
    %s24 = scalar_lea.sflag [#allocation5], 1
    %25 = vsyncpa %s24, 0
    %26 = vsyncpa [#allocation14], 0
    %s27 = scalar_lea.sflag [#allocation14], 1
    %28 = vsyncpa %s27, 0
    loop: start=0, step=1, limit=4
    $region2: #{tpu_custom_call.1} parent=1 // loop_pre_header
      _
    $region3: #{tpu_custom_call.1} parent=1 // loop_header
      %s30 = sphi 0, %s34
      %p31 = scmp.ge.s32.totalorder %s30, 4
      %s40 = sphi 0, %s42
      %s43 = sphi 0, %s40
      %s44 = sphi 0, %s43
      %s60 = sphi 0, %s44
      %s64 = sphi 0, %s64
      %s66 = sphi 0, %s64
      %s67 = sphi 0, %s66
      %s81 = sphi 0, %s67
      %s85 = sphi 0, %s85
      %s87 = sphi 0, %s85
      %s88 = sphi 0, %s87
      %s102 = sphi 0, %s88
      %s106 = sphi 0, %s106
      %s108 = sphi 0, %s106
      %s109 = sphi 0, %s108
      %s123 = sphi 0, %s109
      %s127 = sphi 0, %s127
      %s129 = sphi 0, %s127
      %s130 = sphi 0, %s129
      %s144 = sphi 0, %s130
      %s148 = sphi 0, %s148
      %s150 = sphi 0, %s148
      %s151 = sphi 0, %s150
      %s165 = sphi 0, %s151
      %s169 = sphi 0, %s169
      %s171 = sphi 0, %s169
      %s172 = sphi 0, %s171
      %s186 = sphi 0, %s172
      %s190 = sphi 0, %s190
      %s192 = sphi 0, %s190
      %s193 = sphi 0, %s192
      %s207 = sphi 0, %s193
      %s211 = sphi 0, %s211
      %s213 = sphi 0, %s211
      %s214 = sphi 0, %s213
      %s228 = sphi 0, %s214
      %s232 = sphi 0, %s232
      %s234 = sphi 0, %s232
      %s235 = sphi 0, %s234
      %s249 = sphi 0, %s235
      %s253 = sphi 0, %s253
      %s255 = sphi 0, %s253
      %s256 = sphi 0, %s255
      %s270 = sphi 0, %s256
      %s276 = sphi 0, %s278
      %s279 = sphi 0, %s276
      %s280 = sphi 0, %s279
      %s296 = sphi 0, %s280
      %s302 = sphi 0, %s304
      %s305 = sphi 0, %s302
      %s306 = sphi 0, %s305
      %s322 = sphi 0, %s306
    $region4: #{tpu_custom_call.1} parent=1 // loop_header_branch
      %33 = sbr.rel (%p31) target = $region8
    $region5: #{tpu_custom_call.1} parent=1 // loop_body
      %s35 = ssub.s32 %s30, 1
      %s36 = ssub.s32 %s30, 2
      %s37 = sadd.s32 %s30, 1
      %s38 = ssub.s32 %s30, %s37
      %p39 = scmp.eq.s32.totalorder %s38, 0
      %s41 = sadd.s32 %s40, 1
      %s42 = scalar_select %p39, %s40, %s41
      %p45 = pneg %p39
      %p46 = scmp.eq.s32.totalorder %s30, 1
      %p47 = por %p45, %p46
      %p48 = scmp.ne.s32.totalorder %s40, %s43
      %p49 = scmp.eq.s32.totalorder %s30, 0
      %p50 = por %p48, %p49
      %p51 = scmp.ne.s32.totalorder %s40, %s43
      %p52 = scmp.eq.s32.totalorder %s35, 1
      %p53 = por %p51, %p52
      %p54 = scmp.ne.s32.totalorder %s43, %s44
      %p55 = scmp.eq.s32.totalorder %s35, 0
      %p56 = por %p54, %p55
      %p57 = scmp.ne.s32.totalorder %s43, %s44
      %p58 = scmp.eq.s32.totalorder %s36, 1
      %p59 = por %p57, %p58
      %p61 = scmp.ne.s32.totalorder %s44, %s60
      %p62 = scmp.eq.s32.totalorder %s36, 0
      %p63 = por %p61, %p62
      %s65 = sadd.s32 %s64, 1
      %p68 = scmp.eq.s32.totalorder %s30, 1
      %p69 = scmp.ne.s32.totalorder %s64, %s66
      %p70 = scmp.eq.s32.totalorder %s30, 0
      %p71 = por %p69, %p70
      %p72 = scmp.ne.s32.totalorder %s64, %s66
      %p73 = scmp.eq.s32.totalorder %s35, 1
      %p74 = por %p72, %p73
      %p75 = scmp.ne.s32.totalorder %s66, %s67
      %p76 = scmp.eq.s32.totalorder %s35, 0
      %p77 = por %p75, %p76
      %p78 = scmp.ne.s32.totalorder %s66, %s67
      %p79 = scmp.eq.s32.totalorder %s36, 1
      %p80 = por %p78, %p79
      %p82 = scmp.ne.s32.totalorder %s67, %s81
      %p83 = scmp.eq.s32.totalorder %s36, 0
      %p84 = por %p82, %p83
      %s86 = sadd.s32 %s85, 1
      %p89 = scmp.eq.s32.totalorder %s30, 1
      %p90 = scmp.ne.s32.totalorder %s85, %s87
      %p91 = scmp.eq.s32.totalorder %s30, 0
      %p92 = por %p90, %p91
      %p93 = scmp.ne.s32.totalorder %s85, %s87
      %p94 = scmp.eq.s32.totalorder %s35, 1
      %p95 = por %p93, %p94
      %p96 = scmp.ne.s32.totalorder %s87, %s88
      %p97 = scmp.eq.s32.totalorder %s35, 0
      %p98 = por %p96, %p97
      %p99 = scmp.ne.s32.totalorder %s87, %s88
      %p100 = scmp.eq.s32.totalorder %s36, 1
      %p101 = por %p99, %p100
      %p103 = scmp.ne.s32.totalorder %s88, %s102
      %p104 = scmp.eq.s32.totalorder %s36, 0
      %p105 = por %p103, %p104
      %s107 = sadd.s32 %s106, 1
      %p110 = scmp.eq.s32.totalorder %s30, 1
      %p111 = scmp.ne.s32.totalorder %s106, %s108
      %p112 = scmp.eq.s32.totalorder %s30, 0
      %p113 = por %p111, %p112
      %p114 = scmp.ne.s32.totalorder %s106, %s108
      %p115 = scmp.eq.s32.totalorder %s35, 1
      %p116 = por %p114, %p115
      %p117 = scmp.ne.s32.totalorder %s108, %s109
      %p118 = scmp.eq.s32.totalorder %s35, 0
      %p119 = por %p117, %p118
      %p120 = scmp.ne.s32.totalorder %s108, %s109
      %p121 = scmp.eq.s32.totalorder %s36, 1
      %p122 = por %p120, %p121
      %p124 = scmp.ne.s32.totalorder %s109, %s123
      %p125 = scmp.eq.s32.totalorder %s36, 0
      %p126 = por %p124, %p125
      %s128 = sadd.s32 %s127, 1
      %p131 = scmp.eq.s32.totalorder %s30, 1
      %p132 = scmp.ne.s32.totalorder %s127, %s129
      %p133 = scmp.eq.s32.totalorder %s30, 0
      %p134 = por %p132, %p133
      %p135 = scmp.ne.s32.totalorder %s127, %s129
      %p136 = scmp.eq.s32.totalorder %s35, 1
      %p137 = por %p135, %p136
      %p138 = scmp.ne.s32.totalorder %s129, %s130
      %p139 = scmp.eq.s32.totalorder %s35, 0
      %p140 = por %p138, %p139
      %p141 = scmp.ne.s32.totalorder %s129, %s130
      %p142 = scmp.eq.s32.totalorder %s36, 1
      %p143 = por %p141, %p142
      %p145 = scmp.ne.s32.totalorder %s130, %s144
      %p146 = scmp.eq.s32.totalorder %s36, 0
      %p147 = por %p145, %p146
      %s149 = sadd.s32 %s148, 1
      %p152 = scmp.eq.s32.totalorder %s30, 1
      %p153 = scmp.ne.s32.totalorder %s148, %s150
      %p154 = scmp.eq.s32.totalorder %s30, 0
      %p155 = por %p153, %p154
      %p156 = scmp.ne.s32.totalorder %s148, %s150
      %p157 = scmp.eq.s32.totalorder %s35, 1
      %p158 = por %p156, %p157
      %p159 = scmp.ne.s32.totalorder %s150, %s151
      %p160 = scmp.eq.s32.totalorder %s35, 0
      %p161 = por %p159, %p160
      %p162 = scmp.ne.s32.totalorder %s150, %s151
      %p163 = scmp.eq.s32.totalorder %s36, 1
      %p164 = por %p162, %p163
      %p166 = scmp.ne.s32.totalorder %s151, %s165
      %p167 = scmp.eq.s32.totalorder %s36, 0
      %p168 = por %p166, %p167
      %s170 = sadd.s32 %s169, 1
      %p173 = scmp.eq.s32.totalorder %s30, 1
      %p174 = scmp.ne.s32.totalorder %s169, %s171
      %p175 = scmp.eq.s32.totalorder %s30, 0
      %p176 = por %p174, %p175
      %p177 = scmp.ne.s32.totalorder %s169, %s171
      %p178 = scmp.eq.s32.totalorder %s35, 1
      %p179 = por %p177, %p178
      %p180 = scmp.ne.s32.totalorder %s171, %s172
      %p181 = scmp.eq.s32.totalorder %s35, 0
      %p182 = por %p180, %p181
      %p183 = scmp.ne.s32.totalorder %s171, %s172
      %p184 = scmp.eq.s32.totalorder %s36, 1
      %p185 = por %p183, %p184
      %p187 = scmp.ne.s32.totalorder %s172, %s186
      %p188 = scmp.eq.s32.totalorder %s36, 0
      %p189 = por %p187, %p188
      %s191 = sadd.s32 %s190, 1
      %p194 = scmp.eq.s32.totalorder %s30, 1
      %p195 = scmp.ne.s32.totalorder %s190, %s192
      %p196 = scmp.eq.s32.totalorder %s30, 0
      %p197 = por %p195, %p196
      %p198 = scmp.ne.s32.totalorder %s190, %s192
      %p199 = scmp.eq.s32.totalorder %s35, 1
      %p200 = por %p198, %p199
      %p201 = scmp.ne.s32.totalorder %s192, %s193
      %p202 = scmp.eq.s32.totalorder %s35, 0
      %p203 = por %p201, %p202
      %p204 = scmp.ne.s32.totalorder %s192, %s193
      %p205 = scmp.eq.s32.totalorder %s36, 1
      %p206 = por %p204, %p205
      %p208 = scmp.ne.s32.totalorder %s193, %s207
      %p209 = scmp.eq.s32.totalorder %s36, 0
      %p210 = por %p208, %p209
      %s212 = sadd.s32 %s211, 1
      %p215 = scmp.eq.s32.totalorder %s30, 1
      %p216 = scmp.ne.s32.totalorder %s211, %s213
      %p217 = scmp.eq.s32.totalorder %s30, 0
      %p218 = por %p216, %p217
      %p219 = scmp.ne.s32.totalorder %s211, %s213
      %p220 = scmp.eq.s32.totalorder %s35, 1
      %p221 = por %p219, %p220
      %p222 = scmp.ne.s32.totalorder %s213, %s214
      %p223 = scmp.eq.s32.totalorder %s35, 0
      %p224 = por %p222, %p223
      %p225 = scmp.ne.s32.totalorder %s213, %s214
      %p226 = scmp.eq.s32.totalorder %s36, 1
      %p227 = por %p225, %p226
      %p229 = scmp.ne.s32.totalorder %s214, %s228
      %p230 = scmp.eq.s32.totalorder %s36, 0
      %p231 = por %p229, %p230
      %s233 = sadd.s32 %s232, 1
      %p236 = scmp.eq.s32.totalorder %s30, 1
      %p237 = scmp.ne.s32.totalorder %s232, %s234
      %p238 = scmp.eq.s32.totalorder %s30, 0
      %p239 = por %p237, %p238
      %p240 = scmp.ne.s32.totalorder %s232, %s234
      %p241 = scmp.eq.s32.totalorder %s35, 1
      %p242 = por %p240, %p241
      %p243 = scmp.ne.s32.totalorder %s234, %s235
      %p244 = scmp.eq.s32.totalorder %s35, 0
      %p245 = por %p243, %p244
      %p246 = scmp.ne.s32.totalorder %s234, %s235
      %p247 = scmp.eq.s32.totalorder %s36, 1
      %p248 = por %p246, %p247
      %p250 = scmp.ne.s32.totalorder %s235, %s249
      %p251 = scmp.eq.s32.totalorder %s36, 0
      %p252 = por %p250, %p251
      %s254 = sadd.s32 %s253, 1
      %p257 = scmp.eq.s32.totalorder %s30, 1
      %p258 = scmp.ne.s32.totalorder %s253, %s255
      %p259 = scmp.eq.s32.totalorder %s30, 0
      %p260 = por %p258, %p259
      %p261 = scmp.ne.s32.totalorder %s253, %s255
      %p262 = scmp.eq.s32.totalorder %s35, 1
      %p263 = por %p261, %p262
      %p264 = scmp.ne.s32.totalorder %s255, %s256
      %p265 = scmp.eq.s32.totalorder %s35, 0
      %p266 = por %p264, %p265
      %p267 = scmp.ne.s32.totalorder %s255, %s256
      %p268 = scmp.eq.s32.totalorder %s36, 1
      %p269 = por %p267, %p268
      %p271 = scmp.ne.s32.totalorder %s256, %s270
      %p272 = scmp.eq.s32.totalorder %s36, 0
      %p273 = por %p271, %p272
      %s274 = ssub.s32 %s30, %s37
      %p275 = scmp.eq.s32.totalorder %s274, 0
      %s277 = sadd.s32 %s276, 1
      %s278 = scalar_select %p275, %s276, %s277
      %p281 = pneg %p275
      %p282 = scmp.eq.s32.totalorder %s30, 1
      %p283 = por %p281, %p282
      %p284 = scmp.ne.s32.totalorder %s276, %s279
      %p285 = scmp.eq.s32.totalorder %s30, 0
      %p286 = por %p284, %p285
      %p287 = scmp.ne.s32.totalorder %s276, %s279
      %p288 = scmp.eq.s32.totalorder %s35, 1
      %p289 = por %p287, %p288
      %p290 = scmp.ne.s32.totalorder %s279, %s280
      %p291 = scmp.eq.s32.totalorder %s35, 0
      %p292 = por %p290, %p291
      %p293 = scmp.ne.s32.totalorder %s279, %s280
      %p294 = scmp.eq.s32.totalorder %s36, 1
      %p295 = por %p293, %p294
      %p297 = scmp.ne.s32.totalorder %s280, %s296
      %p298 = scmp.eq.s32.totalorder %s36, 0
      %p299 = por %p297, %p298
      %s300 = ssub.s32 %s30, %s37
      %p301 = scmp.eq.s32.totalorder %s300, 0
      %s303 = sadd.s32 %s302, 1
      %s304 = scalar_select %p301, %s302, %s303
      %p307 = pneg %p301
      %p308 = scmp.eq.s32.totalorder %s30, 1
      %p309 = por %p307, %p308
      %p310 = scmp.ne.s32.totalorder %s302, %s305
      %p311 = scmp.eq.s32.totalorder %s30, 0
      %p312 = por %p310, %p311
      %p313 = scmp.ne.s32.totalorder %s302, %s305
      %p314 = scmp.eq.s32.totalorder %s35, 1
      %p315 = por %p313, %p314
      %p316 = scmp.ne.s32.totalorder %s305, %s306
      %p317 = scmp.eq.s32.totalorder %s35, 0
      %p318 = por %p316, %p317
      %p319 = scmp.ne.s32.totalorder %s305, %s306
      %p320 = scmp.eq.s32.totalorder %s36, 1
      %p321 = por %p319, %p320
      %p323 = scmp.ne.s32.totalorder %s306, %s322
      %p324 = scmp.eq.s32.totalorder %s36, 0
      %p325 = por %p323, %p324
      %p326 = scmp.le.s32.totalorder 1, %s30
      %p327 = scmp.lt.s32.totalorder %s30, 3
      %p328 = pnand %p326, %p327
      %p329 = pneg %p328
      // Predicated region
      $region9: #{tpu_custom_call.1} parent=5 // pred_check
        _
      $region10: #{tpu_custom_call.1} parent=5 // pred_check_branch
        %331 = sbr.rel (%p328) target = $region12
      $region11: #{tpu_custom_call.1} parent=5 // pred_region
        %s332 = ssub.s32 %s30, 1
        // Predicated region
        $region13: #{tpu_custom_call.1} parent=11 // pred_check
          %p333 = pneg %p77
        $region14: #{tpu_custom_call.1} parent=11 // pred_check_branch
          %335 = sbr.rel (%p333) target = $region16
        $region15: #{tpu_custom_call.1} parent=11 // pred_region
          %s337 = ssub.s32 3072, 3072
          %338 = vsyncadd [#allocation7], %s337
          %s339 = sshll.u32 [#allocation6], 4
          %s340 = int_to_ptr.vmem [resolvable:$true] %s339
          %345 = dma.hbm_to_vmem [thread:$0]  %s1, 3072, %s340, [#allocation7], 192, 192, 12
        $region16: #{tpu_custom_call.1} parent=11 // pred_fallthru
          _
        // Predicated region
        $region17: #{tpu_custom_call.1} parent=11 // pred_check
          %p346 = pneg %p98
        $region18: #{tpu_custom_call.1} parent=11 // pred_check_branch
          %348 = sbr.rel (%p346) target = $region20
        $region19: #{tpu_custom_call.1} parent=11 // pred_region
          %s350 = ssub.s32 1024, 1024
          %351 = vsyncadd [#allocation7], %s350
          %s352 = sshll.u32 [#allocation8], 4
          %s353 = int_to_ptr.vmem [resolvable:$true] %s352
          %358 = dma.hbm_to_vmem [thread:$0]  %s2, 1024, %s353, [#allocation7], 64, 64, 4
        $region20: #{tpu_custom_call.1} parent=11 // pred_fallthru
          _
        // Predicated region
        $region21: #{tpu_custom_call.1} parent=11 // pred_check
          %p359 = pneg %p119
        $region22: #{tpu_custom_call.1} parent=11 // pred_check_branch
          %361 = sbr.rel (%p359) target = $region24
        $region23: #{tpu_custom_call.1} parent=11 // pred_region
          _
        $region24: #{tpu_custom_call.1} parent=11 // pred_fallthru
          _
        // Predicated region
        $region25: #{tpu_custom_call.1} parent=11 // pred_check
          %p362 = pneg %p140
        $region26: #{tpu_custom_call.1} parent=11 // pred_check_branch
          %364 = sbr.rel (%p362) target = $region28
        $region27: #{tpu_custom_call.1} parent=11 // pred_region
          _
        $region28: #{tpu_custom_call.1} parent=11 // pred_fallthru
          _
        // Predicated region
        $region29: #{tpu_custom_call.1} parent=11 // pred_check
          %p365 = pneg %p161
        $region30: #{tpu_custom_call.1} parent=11 // pred_check_branch
          %367 = sbr.rel (%p365) target = $region32
        $region31: #{tpu_custom_call.1} parent=11 // pred_region
          %s369 = ssub.s32 2048, 2048
          %370 = vsyncadd [#allocation10], %s369
          %s371 = sshll.u32 [#allocation9], 4
          %s372 = int_to_ptr.vmem [resolvable:$true] %s371
          %377 = dma.hbm_to_vmem [thread:$0]  %s5, 2048, %s372, [#allocation10], 128, 128, 8
        $region32: #{tpu_custom_call.1} parent=11 // pred_fallthru
          _
        // Predicated region
        $region33: #{tpu_custom_call.1} parent=11 // pred_check
          %p378 = pneg %p182
        $region34: #{tpu_custom_call.1} parent=11 // pred_check_branch
          %380 = sbr.rel (%p378) target = $region36
        $region35: #{tpu_custom_call.1} parent=11 // pred_region
          _
        $region36: #{tpu_custom_call.1} parent=11 // pred_fallthru
          _
        // Predicated region
        $region37: #{tpu_custom_call.1} parent=11 // pred_check
          %p381 = pneg %p203
        $region38: #{tpu_custom_call.1} parent=11 // pred_check_branch
          %383 = sbr.rel (%p381) target = $region40
        $region39: #{tpu_custom_call.1} parent=11 // pred_region
          %s385 = ssub.s32 2048, 2048
          %386 = vsyncadd [#allocation10], %s385
          %s387 = sshll.u32 [#allocation11], 4
          %s388 = int_to_ptr.vmem [resolvable:$true] %s387
          %393 = dma.hbm_to_vmem [thread:$0]  %s7, 2048, %s388, [#allocation10], 64, 64, 4
        $region40: #{tpu_custom_call.1} parent=11 // pred_fallthru
          _
        // Predicated region
        $region41: #{tpu_custom_call.1} parent=11 // pred_check
          %p394 = pneg %p224
        $region42: #{tpu_custom_call.1} parent=11 // pred_check_branch
          %396 = sbr.rel (%p394) target = $region44
        $region43: #{tpu_custom_call.1} parent=11 // pred_region
          _
        $region44: #{tpu_custom_call.1} parent=11 // pred_fallthru
          _
        // Predicated region
        $region45: #{tpu_custom_call.1} parent=11 // pred_check
          %p397 = pneg %p245
        $region46: #{tpu_custom_call.1} parent=11 // pred_check_branch
          %399 = sbr.rel (%p397) target = $region48
        $region47: #{tpu_custom_call.1} parent=11 // pred_region
          _
        $region48: #{tpu_custom_call.1} parent=11 // pred_fallthru
          _
        // Predicated region
        $region49: #{tpu_custom_call.1} parent=11 // pred_check
          %p400 = pneg %p266
        $region50: #{tpu_custom_call.1} parent=11 // pred_check_branch
          %402 = sbr.rel (%p400) target = $region52
        $region51: #{tpu_custom_call.1} parent=11 // pred_region
          _
        $region52: #{tpu_custom_call.1} parent=11 // pred_fallthru
          _
      $region12: #{tpu_custom_call.1} parent=5 // pred_fallthru
        _
      %p403 = scmp.lt.s32.totalorder %s30, 2
      // Predicated region
      $region53: #{tpu_custom_call.1} parent=5 // pred_check
        %p404 = pneg %p403
      $region54: #{tpu_custom_call.1} parent=5 // pred_check_branch
        %406 = sbr.rel (%p404) target = $region56
      $region55: #{tpu_custom_call.1} parent=5 // pred_region
        // Predicated region
        $region57: #{tpu_custom_call.1} parent=55 // pred_check
          %p407 = pneg %p50
        $region58: #{tpu_custom_call.1} parent=55 // pred_check_branch
          %409 = sbr.rel (%p407) target = $region60
        $region59: #{tpu_custom_call.1} parent=55 // pred_region
          %s410 = sand.u32 %s40, 1
          %s411 = scalar_lea.sflag [#allocation4], %s410
          %s412 = sand.u32 %s40, 1
          %s413 = smul.addr %s412, 16
          %s414 = scalar_lea.vmem [#allocation3], %s413
          %s416 = ssub.s32 256, 256
          %417 = vsyncadd %s411, %s416
          %s418 = smul.addr %s30, 2
          %s419 = smul.addr %s418, 128
          %s420 = scalar_lea.hbm %s0, %s419
          %s421 = sshll.u32 %s414, 4
          %s422 = int_to_ptr.vmem [resolvable:$true] %s421
          %427 = dma.hbm_to_vmem [thread:$0]  %s420, 256, %s422, %s411, 128, 128, 8
        $region60: #{tpu_custom_call.1} parent=55 // pred_fallthru
          _
      $region56: #{tpu_custom_call.1} parent=5 // pred_fallthru
        _
      %p428 = scmp.le.s32.totalorder 1, %s30
      %p429 = scmp.lt.s32.totalorder %s30, 3
      %p430 = pnand %p428, %p429
      %p431 = pneg %p430
      // Predicated region
      $region61: #{tpu_custom_call.1} parent=5 // pred_check
        _
      $region62: #{tpu_custom_call.1} parent=5 // pred_check_branch
        %433 = sbr.rel (%p430) target = $region64
      $region63: #{tpu_custom_call.1} parent=5 // pred_region
        %s434 = ssub.s32 %s30, 1
        %s435 = sand.u32 %s43, 1
        %s436 = scalar_lea.sflag [#allocation4], %s435
        %s437 = sand.u32 %s43, 1
        %s438 = smul.addr %s437, 16
        %s439 = scalar_lea.vmem [#allocation3], %s438
        // Predicated region
        $region65: #{tpu_custom_call.1} parent=63 // pred_check
          %p440 = pneg %p56
        $region66: #{tpu_custom_call.1} parent=63 // pred_check_branch
          %442 = sbr.rel (%p440) target = $region68
        $region67: #{tpu_custom_call.1} parent=63 // pred_region
          %443 = dma.done %s436, 256
        $region68: #{tpu_custom_call.1} parent=63 // pred_fallthru
          _
        // Predicated region
        $region69: #{tpu_custom_call.1} parent=63 // pred_check
          %p444 = pneg %p77
        $region70: #{tpu_custom_call.1} parent=63 // pred_check_branch
          %446 = sbr.rel (%p444) target = $region72
        $region71: #{tpu_custom_call.1} parent=63 // pred_region
          %447 = dma.done [#allocation7], 3072
        $region72: #{tpu_custom_call.1} parent=63 // pred_fallthru
          _
        // Predicated region
        $region73: #{tpu_custom_call.1} parent=63 // pred_check
          %p448 = pneg %p98
        $region74: #{tpu_custom_call.1} parent=63 // pred_check_branch
          %450 = sbr.rel (%p448) target = $region76
        $region75: #{tpu_custom_call.1} parent=63 // pred_region
          %451 = dma.done [#allocation7], 1024
        $region76: #{tpu_custom_call.1} parent=63 // pred_fallthru
          _
        // Predicated region
        $region77: #{tpu_custom_call.1} parent=63 // pred_check
          %p452 = pneg %p161
        $region78: #{tpu_custom_call.1} parent=63 // pred_check_branch
          %454 = sbr.rel (%p452) target = $region80
        $region79: #{tpu_custom_call.1} parent=63 // pred_region
          %455 = dma.done [#allocation10], 2048
        $region80: #{tpu_custom_call.1} parent=63 // pred_fallthru
          _
        // Predicated region
        $region81: #{tpu_custom_call.1} parent=63 // pred_check
          %p456 = pneg %p203
        $region82: #{tpu_custom_call.1} parent=63 // pred_check_branch
          %458 = sbr.rel (%p456) target = $region84
        $region83: #{tpu_custom_call.1} parent=63 // pred_region
          %459 = dma.done [#allocation10], 2048
        $region84: #{tpu_custom_call.1} parent=63 // pred_fallthru
          _
        %s460 = sand.u32 %s43, 1
        %s461 = scalar_lea.sflag [#allocation4], %s460
        %s462 = sand.u32 %s43, 1
        %s463 = smul.addr %s462, 16
        %s464 = scalar_lea.vmem [#allocation3], %s463
        %p465 = pneg %p56
        %p466 = pneg %p53
        %p467 = pneg %p77
        %p468 = pneg %p74
        %p469 = pneg %p98
        %p470 = pneg %p95
        %p471 = pneg %p119
        %p472 = pneg %p116
        %p473 = pneg %p140
        %p474 = pneg %p137
        %p475 = pneg %p161
        %p476 = pneg %p158
        %p477 = pneg %p182
        %p478 = pneg %p179
        %p479 = pneg %p203
        %p480 = pneg %p200
        %p481 = pneg %p224
        %p482 = pneg %p221
        %p483 = pneg %p245
        %p484 = pneg %p242
        %p485 = pneg %p266
        %p486 = pneg %p263
        %p487 = pneg %p292
        %p488 = pneg %p289
        %s489 = sand.u32 %s279, 1
        %s490 = scalar_lea.sflag [#allocation5], %s489
        %s491 = sand.u32 %s279, 1
        %s492 = smul.addr %s491, 16
        %s493 = scalar_lea.vmem [#allocation12], %s492
        %p494 = pneg %p318
        %p495 = pneg %p315
        %s496 = sand.u32 %s305, 1
        %s497 = scalar_lea.sflag [#allocation14], %s496
        %s498 = sand.u32 %s305, 1
        %s499 = smul.addr %s498, 64
        %s500 = scalar_lea.vmem [#allocation13], %s499
        %v502 = vld [vmem:[%s439] sm:$0xff]
        %v503 = vld [vmem:[%s439 + $0x8] sm:$0xff]
        %v504 = vpack.c.bf16 %v503, %v502
        %v505 = vld [vmem:[#allocation6] sm:$0xff]
        %v506 = vld [vmem:[#allocation6 + $0x8] sm:$0xf]
        %v507 = vld [vmem:[#allocation6 + $0xc] sm:$0xff]
        %v508 = vld [vmem:[#allocation6 + $0x14] sm:$0xf]
        %v509 = vld [vmem:[#allocation6 + $0x18] sm:$0xff]
        %v510 = vld [vmem:[#allocation6 + $0x20] sm:$0xf]
        %v511 = vld [vmem:[#allocation6 + $0x24] sm:$0xff]
        %v512 = vld [vmem:[#allocation6 + $0x2c] sm:$0xf]
        %v513 = vld [vmem:[#allocation6 + $0x30] sm:$0xff]
        %v514 = vld [vmem:[#allocation6 + $0x38] sm:$0xf]
        %v515 = vld [vmem:[#allocation6 + $0x3c] sm:$0xff]
        %v516 = vld [vmem:[#allocation6 + $0x44] sm:$0xf]
        %v517 = vld [vmem:[#allocation6 + $0x48] sm:$0xff]
        %v518 = vld [vmem:[#allocation6 + $0x50] sm:$0xf]
        %v519 = vld [vmem:[#allocation6 + $0x54] sm:$0xff]
        %v520 = vld [vmem:[#allocation6 + $0x5c] sm:$0xf]
        %v521 = vld [vmem:[#allocation6 + $0x60] sm:$0xff]
        %v522 = vld [vmem:[#allocation6 + $0x68] sm:$0xf]
        %v523 = vld [vmem:[#allocation6 + $0x6c] sm:$0xff]
        %v524 = vld [vmem:[#allocation6 + $0x74] sm:$0xf]
        %v525 = vld [vmem:[#allocation6 + $0x78] sm:$0xff]
        %v526 = vld [vmem:[#allocation6 + $0x80] sm:$0xf]
        %v527 = vld [vmem:[#allocation6 + $0x84] sm:$0xff]
        %v528 = vld [vmem:[#allocation6 + $0x8c] sm:$0xf]
        %v529 = vld [vmem:[#allocation6 + $0x90] sm:$0xff]
        %v530 = vld [vmem:[#allocation6 + $0x98] sm:$0xf]
        %v531 = vld [vmem:[#allocation6 + $0x9c] sm:$0xff]
        %v532 = vld [vmem:[#allocation6 + $0xa4] sm:$0xf]
        %v533 = vld [vmem:[#allocation6 + $0xa8] sm:$0xff]
        %v534 = vld [vmem:[#allocation6 + $0xb0] sm:$0xf]
        %v535 = vld [vmem:[#allocation6 + $0xb4] sm:$0xff]
        %v536 = vld [vmem:[#allocation6 + $0xbc] sm:$0xf]
        %v569 = vunpack.c.l.b16 %v505
        %v570 = vunpack.c.h.b16 %v505
        %v571 = vunpack.c.l.b16 %v506
        %v572 = vunpack.c.l.b16 %v507
        %v573 = vunpack.c.h.b16 %v507
        %v574 = vunpack.c.l.b16 %v508
        %v575 = vunpack.c.l.b16 %v509
        %v576 = vunpack.c.h.b16 %v509
        %v577 = vunpack.c.l.b16 %v510
        %v578 = vunpack.c.l.b16 %v511
        %v579 = vunpack.c.h.b16 %v511
        %v580 = vunpack.c.l.b16 %v512
        %v581 = vunpack.c.l.b16 %v513
        %v582 = vunpack.c.h.b16 %v513
        %v583 = vunpack.c.l.b16 %v514
        %v584 = vunpack.c.l.b16 %v515
        %v585 = vunpack.c.h.b16 %v515
        %v586 = vunpack.c.l.b16 %v516
        %v587 = vunpack.c.l.b16 %v517
        %v588 = vunpack.c.h.b16 %v517
        %v589 = vunpack.c.l.b16 %v518
        %v590 = vunpack.c.l.b16 %v519
        %v591 = vunpack.c.h.b16 %v519
        %v592 = vunpack.c.l.b16 %v520
        %v593 = vunpack.c.l.b16 %v521
        %v594 = vunpack.c.h.b16 %v521
        %v595 = vunpack.c.l.b16 %v522
        %v596 = vunpack.c.l.b16 %v523
        %v597 = vunpack.c.h.b16 %v523
        %v598 = vunpack.c.l.b16 %v524
        %v599 = vunpack.c.l.b16 %v525
        %v600 = vunpack.c.h.b16 %v525
        %v601 = vunpack.c.l.b16 %v526
        %v602 = vunpack.c.l.b16 %v527
        %v603 = vunpack.c.h.b16 %v527
        %v604 = vunpack.c.l.b16 %v528
        %v605 = vunpack.c.l.b16 %v529
        %v606 = vunpack.c.h.b16 %v529
        %v607 = vunpack.c.l.b16 %v530
        %v608 = vunpack.c.l.b16 %v531
        %v609 = vunpack.c.h.b16 %v531
        %v610 = vunpack.c.l.b16 %v532
        %v611 = vunpack.c.l.b16 %v533
        %v612 = vunpack.c.h.b16 %v533
        %v613 = vunpack.c.l.b16 %v534
        %v614 = vunpack.c.l.b16 %v535
        %v615 = vunpack.c.h.b16 %v535
        %v616 = vunpack.c.l.b16 %v536
        %v617 = vpack.c.b16 %v572, %v569
        %v618 = vpack.c.b16 %v573, %v570
        %v619 = vpack.c.b16 %v574, %v571
        %v620 = vpack.c.b16 %v578, %v575
        %v621 = vpack.c.b16 %v579, %v576
        %v622 = vpack.c.b16 %v580, %v577
        %v623 = vpack.c.b16 %v584, %v581
        %v624 = vpack.c.b16 %v585, %v582
        %v625 = vpack.c.b16 %v586, %v583
        %v626 = vpack.c.b16 %v590, %v587
        %v627 = vpack.c.b16 %v591, %v588
        %v628 = vpack.c.b16 %v592, %v589
        %v629 = vpack.c.b16 %v596, %v593
        %v630 = vpack.c.b16 %v597, %v594
        %v631 = vpack.c.b16 %v598, %v595
        %v632 = vpack.c.b16 %v602, %v599
        %v633 = vpack.c.b16 %v603, %v600
        %v634 = vpack.c.b16 %v604, %v601
        %v635 = vpack.c.b16 %v608, %v605
        %v636 = vpack.c.b16 %v609, %v606
        %v637 = vpack.c.b16 %v610, %v607
        %v638 = vpack.c.b16 %v614, %v611
        %v639 = vpack.c.b16 %v615, %v612
        %v640 = vpack.c.b16 %v616, %v613
        %665 = vmatprep.subr.bf16.mxu0 %v618
        %666 = vmatpush1.bf16.msra.mxu0 %v617
        %667 = vmatprep.subr.bf16.mxu0 %v621
        %668 = vmatpush1.bf16.msra.mxu0 %v620
        %669 = vmatprep.subr.bf16.mxu0 %v624
        %670 = vmatpush1.bf16.msra.mxu0 %v623
        %671 = vmatprep.subr.bf16.mxu0 %v627
        %672 = vmatpush1.bf16.msra.mxu0 %v626
        %673 = vmatprep.subr.bf16.mxu0 %v630
        %674 = vmatpush1.bf16.msra.mxu0 %v629
        %675 = vmatprep.subr.bf16.mxu0 %v633
        %676 = vmatpush1.bf16.msra.mxu0 %v632
        %677 = vmatprep.subr.bf16.mxu0 %v636
        %678 = vmatpush1.bf16.msra.mxu0 %v635
        %679 = vmatprep.subr.bf16.mxu0 %v639
        %680 = vmatpush1.bf16.msra.mxu0 %v638
        %681 = vmatprep.subr.bf16.mxu0 0
        %682 = vmatpush1.bf16.msra.mxu0 0
        %683 = vmatprep.subr.bf16.mxu0 0
        %684 = vmatpush1.bf16.msra.mxu0 0
        %685 = vmatprep.subr.bf16.mxu0 0
        %686 = vmatpush1.bf16.msra.mxu0 0
        %687 = vmatprep.subr.bf16.mxu0 0
        %688 = vmatpush1.bf16.msra.mxu0 0
        %689 = vmatprep.subr.bf16.mxu0 0
        %690 = vmatpush1.bf16.msra.mxu0 0
        %691 = vmatprep.subr.bf16.mxu0 0
        %692 = vmatpush1.bf16.msra.mxu0 0
        %693 = vmatprep.subr.bf16.mxu0 0
        %694 = vmatpush1.bf16.msra.mxu0 0
        %695 = vmatprep.subr.bf16.mxu0 0
        %696 = vmatpush1.bf16.msra.mxu0 0
        %697 = vmatprep.mubr.bf16.mxu0 0
        %698 = vmatmul.mubr.bf16.gmra.mrb[0].mxu0 %v504
        %v699 = vpop.f32.mrb[0].mxu0
        %v700 = vadd.f32 0.0, %v699
        %v701 = vpop.f32.mrb[0].mxu0
        %v702 = vadd.f32 0.0, %v701
        %v703 = vpop.f32.mrb[0].mxu0
        %v704 = vadd.f32 0.0, %v703
        %v705 = vpop.f32.mrb[0].mxu0
        %v706 = vadd.f32 0.0, %v705
        %707 = vdwg.mxu0
        %708 = vmatprep.subr.bf16.mxu0 0
        %709 = vmatpush1.bf16.msra.mxu0 %v619
        %710 = vmatprep.subr.bf16.mxu0 0
        %711 = vmatpush1.bf16.msra.mxu0 %v622
        %712 = vmatprep.subr.bf16.mxu0 0
        %713 = vmatpush1.bf16.msra.mxu0 %v625
        %714 = vmatprep.subr.bf16.mxu0 0
        %715 = vmatpush1.bf16.msra.mxu0 %v628
        %716 = vmatprep.subr.bf16.mxu0 0
        %717 = vmatpush1.bf16.msra.mxu0 %v631
        %718 = vmatprep.subr.bf16.mxu0 0
        %719 = vmatpush1.bf16.msra.mxu0 %v634
        %720 = vmatprep.subr.bf16.mxu0 0
        %721 = vmatpush1.bf16.msra.mxu0 %v637
        %722 = vmatprep.subr.bf16.mxu0 0
        %723 = vmatpush1.bf16.msra.mxu0 %v640
        %724 = vmatprep.subr.bf16.mxu0 0
        %725 = vmatpush1.bf16.msra.mxu0 0
        %726 = vmatprep.subr.bf16.mxu0 0
        %727 = vmatpush1.bf16.msra.mxu0 0
        %728 = vmatprep.subr.bf16.mxu0 0
        %729 = vmatpush1.bf16.msra.mxu0 0
        %730 = vmatprep.subr.bf16.mxu0 0
        %731 = vmatpush1.bf16.msra.mxu0 0
        %732 = vmatprep.subr.bf16.mxu0 0
        %733 = vmatpush1.bf16.msra.mxu0 0
        %734 = vmatprep.subr.bf16.mxu0 0
        %735 = vmatpush1.bf16.msra.mxu0 0
        %736 = vmatprep.subr.bf16.mxu0 0
        %737 = vmatpush1.bf16.msra.mxu0 0
        %738 = vmatprep.subr.bf16.mxu0 0
        %739 = vmatpush1.bf16.msra.mxu0 0
        %740 = vmatprep.mubr.bf16.mxu0 0
        %741 = vmatmul.mubr.bf16.gmra.mrb[0].mxu0 %v504
        %v742 = vpop.f32.mrb[0].mxu0
        %v743 = vadd.f32 0.0, %v742
        %v744 = vpop.f32.mrb[0].mxu0
        %v745 = vpop.f32.mrb[0].mxu0
        %v746 = vadd.f32 0.0, %v745
        %v747 = vpop.f32.mrb[0].mxu0
        %748 = vdwg.mxu0
        %v749 = vmul.f32 %v700, 0.17677669
        %v750 = vmul.f32 %v704, 0.17677669
        %v751 = vpack.c.bf16 %v750, %v749
        %v752 = vpack.c.bf16 %v706, %v702
        %v753 = vpack.c.bf16 %v746, %v743
        %vm754 = vcmask 261120
        %v756 = vsel %vm754, %v751, 0
        %v759 = vsel %vm754, %v752, 0
        %761 = vmatprep.subr.bf16.mxu0 0
        %762 = vmatpush1.bf16.xpose.msra.mxu0 %v759
        %763 = vmatprep.subr.bf16.mxu0 0
        %764 = vmatpush1.bf16.xpose.msra.mxu0 0
        %765 = vmatprep.subr.bf16.mxu0 0
        %766 = vmatpush1.bf16.xpose.msra.mxu0 0
        %767 = vmatprep.subr.bf16.mxu0 0
        %768 = vmatpush1.bf16.xpose.msra.mxu0 0
        %769 = vmatprep.subr.bf16.mxu0 0
        %770 = vmatpush1.bf16.xpose.msra.mxu0 0
        %771 = vmatprep.subr.bf16.mxu0 0
        %772 = vmatpush1.bf16.xpose.msra.mxu0 0
        %773 = vmatprep.subr.bf16.mxu0 0
        %774 = vmatpush1.bf16.xpose.msra.mxu0 0
        %775 = vmatprep.subr.bf16.mxu0 0
        %776 = vmatpush1.bf16.xpose.msra.mxu0 0
        %777 = vmatprep.subr.bf16.mxu0 0
        %778 = vmatpush1.bf16.xpose.msra.mxu0 0
        %779 = vmatprep.subr.bf16.mxu0 0
        %780 = vmatpush1.bf16.xpose.msra.mxu0 0
        %781 = vmatprep.subr.bf16.mxu0 0
        %782 = vmatpush1.bf16.xpose.msra.mxu0 0
        %783 = vmatprep.subr.bf16.mxu0 0
        %784 = vmatpush1.bf16.xpose.msra.mxu0 0
        %785 = vmatprep.subr.bf16.mxu0 0
        %786 = vmatpush1.bf16.xpose.msra.mxu0 0
        %787 = vmatprep.subr.bf16.mxu0 0
        %788 = vmatpush1.bf16.xpose.msra.mxu0 0
        %789 = vmatprep.subr.bf16.mxu0 0
        %790 = vmatpush1.bf16.xpose.msra.mxu0 0
        %791 = vmatprep.subr.bf16.mxu0 0
        %792 = vmatpush1.bf16.xpose.msra.mxu0 0
        %793 = vmatprep.mubr.bf16.mxu0 0
        %794 = vmatmul.mubr.bf16.gmra.mrb[0].mxu0 %v756
        %v795 = vpop.f32.mrb[0].mxu0
        %v796 = vadd.f32 0.0, %v795
        %v797 = vpop.f32.mrb[0].mxu0
        %v798 = vpop.f32.mrb[0].mxu0
        %v799 = vadd.f32 0.0, %v798
        %v800 = vpop.f32.mrb[0].mxu0
        %801 = vdwg.mxu0
        %vm802 = vcmask 130048
        %v803 = vsel %vm802, %v796, -inf
        %804 = vmax.xlane.f32.xlu0 %v803
        %v805 = vpop.xlane.xlu0 %804
        %v806 = vsel %vm802, %v799, -inf
        %807 = vmax.xlane.f32.xlu0 %v806
        %v808 = vpop.xlane.xlu0 %807
        %v809 = vsub.f32 %v796, %v805
        %v810 = vsub.f32 %v799, %v808
        %v811 = vmul.f32 %v809, 1.442695
        %v812 = vpow.pop %v811
        %v813 = vmul.f32 %v810, 1.442695
        %v814 = vpow.pop %v813
        %v815 = vsel %vm802, %v812, 0.0
        %816 = vadd.xlane.f32.xlu0 %v815
        %v817 = vpop.xlane.xlu0 %816
        %v818 = vsel %vm802, %v814, 0.0
        %819 = vadd.xlane.f32.xlu0 %v818
        %v820 = vpop.xlane.xlu0 %819
        %v821 = vrcp.pop %v817
        %v822 = vrcp.pop %v820
        %v823 = vmul.f32 %v812, %v821
        %v824 = vmul.f32 %v814, %v822
        %825 = vst.msk [vmem:[%s500] sm:$0xff] %vm802, %v823
        %826 = vst.msk [vmem:[%s500 + $0x8] sm:$0xff] %vm802, %v824
        %v827 = vpack.c.bf16 %v824, %v823
        %v829 = vsel %vm802, %v827, 0
        %831 = vmatprep.subr.bf16.mxu0 0
        %832 = vmatpush1.bf16.msra.mxu0 %v753
        %833 = vmatprep.subr.bf16.mxu0 0
        %834 = vmatpush1.bf16.msra.mxu0 0
        %835 = vmatprep.subr.bf16.mxu0 0
        %836 = vmatpush1.bf16.msra.mxu0 0
        %837 = vmatprep.subr.bf16.mxu0 0
        %838 = vmatpush1.bf16.msra.mxu0 0
        %839 = vmatprep.subr.bf16.mxu0 0
        %840 = vmatpush1.bf16.msra.mxu0 0
        %841 = vmatprep.subr.bf16.mxu0 0
        %842 = vmatpush1.bf16.msra.mxu0 0
        %843 = vmatprep.subr.bf16.mxu0 0
        %844 = vmatpush1.bf16.msra.mxu0 0
        %845 = vmatprep.subr.bf16.mxu0 0
        %846 = vmatpush1.bf16.msra.mxu0 0
        %847 = vmatprep.subr.bf16.mxu0 0
        %848 = vmatpush1.bf16.msra.mxu0 0
        %849 = vmatprep.subr.bf16.mxu0 0
        %850 = vmatpush1.bf16.msra.mxu0 0
        %851 = vmatprep.subr.bf16.mxu0 0
        %852 = vmatpush1.bf16.msra.mxu0 0
        %853 = vmatprep.subr.bf16.mxu0 0
        %854 = vmatpush1.bf16.msra.mxu0 0
        %855 = vmatprep.subr.bf16.mxu0 0
        %856 = vmatpush1.bf16.msra.mxu0 0
        %857 = vmatprep.subr.bf16.mxu0 0
        %858 = vmatpush1.bf16.msra.mxu0 0
        %859 = vmatprep.subr.bf16.mxu0 0
        %860 = vmatpush1.bf16.msra.mxu0 0
        %861 = vmatprep.subr.bf16.mxu0 0
        %862 = vmatpush1.bf16.msra.mxu0 0
        %863 = vmatprep.mubr.bf16.mxu0 0
        %864 = vmatmul.mubr.bf16.gmra.mrb[0].mxu0 %v829
        %v865 = vpop.f32.mrb[0].mxu0
        %v866 = vadd.f32 0.0, %v865
        %v867 = vpop.f32.mrb[0].mxu0
        %v868 = vpop.f32.mrb[0].mxu0
        %v869 = vadd.f32 0.0, %v868
        %v870 = vpop.f32.mrb[0].mxu0
        %871 = vdwg.mxu0
        %872 = vst.msk [vmem:[#allocation2] sm:$0xff] %vm754, %v866
        %873 = vst.msk [vmem:[#allocation2 + $0x8] sm:$0xff] %vm754, %v869
        %875 = vrot.lane.b32.xlu0 %v751, 96
        %v876 = vpop.permute.xlu0 %875
        %878 = vrot.lane.b32.xlu0 %v752, 96
        %v879 = vpop.permute.xlu0 %878
        %v881 = vsel %vm754, %v876, 0
        %v884 = vsel %vm754, %v879, 0
        %886 = vmatprep.subr.bf16.mxu0 0
        %887 = vmatpush1.bf16.xpose.msra.mxu0 %v884
        %888 = vmatprep.subr.bf16.mxu0 0
        %889 = vmatpush1.bf16.xpose.msra.mxu0 0
        %890 = vmatprep.subr.bf16.mxu0 0
        %891 = vmatpush1.bf16.xpose.msra.mxu0 0
        %892 = vmatprep.subr.bf16.mxu0 0
        %893 = vmatpush1.bf16.xpose.msra.mxu0 0
        %894 = vmatprep.subr.bf16.mxu0 0
        %895 = vmatpush1.bf16.xpose.msra.mxu0 0
        %896 = vmatprep.subr.bf16.mxu0 0
        %897 = vmatpush1.bf16.xpose.msra.mxu0 0
        %898 = vmatprep.subr.bf16.mxu0 0
        %899 = vmatpush1.bf16.xpose.msra.mxu0 0
        %900 = vmatprep.subr.bf16.mxu0 0
        %901 = vmatpush1.bf16.xpose.msra.mxu0 0
        %902 = vmatprep.subr.bf16.mxu0 0
        %903 = vmatpush1.bf16.xpose.msra.mxu0 0
        %904 = vmatprep.subr.bf16.mxu0 0
        %905 = vmatpush1.bf16.xpose.msra.mxu0 0
        %906 = vmatprep.subr.bf16.mxu0 0
        %907 = vmatpush1.bf16.xpose.msra.mxu0 0
        %908 = vmatprep.subr.bf16.mxu0 0
        %909 = vmatpush1.bf16.xpose.msra.mxu0 0
        %910 = vmatprep.subr.bf16.mxu0 0
        %911 = vmatpush1.bf16.xpose.msra.mxu0 0
        %912 = vmatprep.subr.bf16.mxu0 0
        %913 = vmatpush1.bf16.xpose.msra.mxu0 0
        %914 = vmatprep.subr.bf16.mxu0 0
        %915 = vmatpush1.bf16.xpose.msra.mxu0 0
        %916 = vmatprep.subr.bf16.mxu0 0
        %917 = vmatpush1.bf16.xpose.msra.mxu0 0
        %918 = vmatprep.mubr.bf16.mxu0 0
        %919 = vmatmul.mubr.bf16.gmra.mrb[0].mxu0 %v881
        %v920 = vpop.f32.mrb[0].mxu0
        %v921 = vadd.f32 0.0, %v920
        %v922 = vpop.f32.mrb[0].mxu0
        %v923 = vpop.f32.mrb[0].mxu0
        %v924 = vadd.f32 0.0, %v923
        %v925 = vpop.f32.mrb[0].mxu0
        %926 = vdwg.mxu0
        %v927 = vsel %vm802, %v921, -inf
        %928 = vmax.xlane.f32.xlu0 %v927
        %v929 = vpop.xlane.xlu0 %928
        %v930 = vsel %vm802, %v924, -inf
        %931 = vmax.xlane.f32.xlu0 %v930
        %v932 = vpop.xlane.xlu0 %931
        %v933 = vsub.f32 %v921, %v929
        %v934 = vsub.f32 %v924, %v932
        %v935 = vmul.f32 %v933, 1.442695
        %v936 = vpow.pop %v935
        %v937 = vmul.f32 %v934, 1.442695
        %v938 = vpow.pop %v937
        %v939 = vsel %vm802, %v936, 0.0
        %940 = vadd.xlane.f32.xlu0 %v939
        %v941 = vpop.xlane.xlu0 %940
        %v942 = vsel %vm802, %v938, 0.0
        %943 = vadd.xlane.f32.xlu0 %v942
        %v944 = vpop.xlane.xlu0 %943
        %v945 = vrcp.pop %v941
        %v946 = vrcp.pop %v944
        %v947 = vmul.f32 %v936, %v945
        %v948 = vmul.f32 %v938, %v946
        %s949 = scalar_lea.vmem %s500, 16 [#allocation13]
        %950 = vst.msk [vmem:[%s949] sm:$0xff] %vm802, %v947
        %951 = vst.msk [vmem:[%s949 + $0x8] sm:$0xff] %vm802, %v948
        %v952 = vpack.c.bf16 %v948, %v947
        %954 = vrot.lane.b32.xlu0 %v753, 96
        %v955 = vpop.permute.xlu0 %954
        %v958 = vsel %vm802, %v952, 0
        %960 = vmatprep.subr.bf16.mxu0 0
        %961 = vmatpush1.bf16.msra.mxu0 %v955
        %962 = vmatprep.subr.bf16.mxu0 0
        %963 = vmatpush1.bf16.msra.mxu0 0
        %964 = vmatprep.subr.bf16.mxu0 0
        %965 = vmatpush1.bf16.msra.mxu0 0
        %966 = vmatprep.subr.bf16.mxu0 0
        %967 = vmatpush1.bf16.msra.mxu0 0
        %968 = vmatprep.subr.bf16.mxu0 0
        %969 = vmatpush1.bf16.msra.mxu0 0
        %970 = vmatprep.subr.bf16.mxu0 0
        %971 = vmatpush1.bf16.msra.mxu0 0
        %972 = vmatprep.subr.bf16.mxu0 0
        %973 = vmatpush1.bf16.msra.mxu0 0
        %974 = vmatprep.subr.bf16.mxu0 0
        %975 = vmatpush1.bf16.msra.mxu0 0
        %976 = vmatprep.subr.bf16.mxu0 0
        %977 = vmatpush1.bf16.msra.mxu0 0
        %978 = vmatprep.subr.bf16.mxu0 0
        %979 = vmatpush1.bf16.msra.mxu0 0
        %980 = vmatprep.subr.bf16.mxu0 0
        %981 = vmatpush1.bf16.msra.mxu0 0
        %982 = vmatprep.subr.bf16.mxu0 0
        %983 = vmatpush1.bf16.msra.mxu0 0
        %984 = vmatprep.subr.bf16.mxu0 0
        %985 = vmatpush1.bf16.msra.mxu0 0
        %986 = vmatprep.subr.bf16.mxu0 0
        %987 = vmatpush1.bf16.msra.mxu0 0
        %988 = vmatprep.subr.bf16.mxu0 0
        %989 = vmatpush1.bf16.msra.mxu0 0
        %990 = vmatprep.subr.bf16.mxu0 0
        %991 = vmatpush1.bf16.msra.mxu0 0
        %992 = vmatprep.mubr.bf16.mxu0 0
        %993 = vmatmul.mubr.bf16.gmra.mrb[0].mxu0 %v958
        %v994 = vpop.f32.mrb[0].mxu0
        %v995 = vadd.f32 0.0, %v994
        %v996 = vpop.f32.mrb[0].mxu0
        %v997 = vpop.f32.mrb[0].mxu0
        %v998 = vadd.f32 0.0, %v997
        %v999 = vpop.f32.mrb[0].mxu0
        %1000 = vdwg.mxu0
        %1003 = vrot.lane.b32.xlu0 %v995, 32
        %v1004 = vpop.permute.xlu0 %1003
        %1005 = vrot.lane.b32.xlu0 %v998, 32
        %v1006 = vpop.permute.xlu0 %1005
        %vm1009 = vcmask 523520
        %1010 = vst.msk [vmem:[#allocation2] sm:$0xff] %vm1009, %v1004
        %1011 = vst.msk [vmem:[#allocation2 + $0x8] sm:$0xff] %vm1009, %v1006
        %1012 = vrot.lane.b32.xlu0 %v751, 64
        %v1013 = vpop.permute.xlu0 %1012
        %1014 = vrot.lane.b32.xlu0 %v752, 64
        %v1015 = vpop.permute.xlu0 %1014
        %v1017 = vsel %vm754, %v1013, 0
        %v1020 = vsel %vm754, %v1015, 0
        %1022 = vmatprep.subr.bf16.mxu0 0
        %1023 = vmatpush1.bf16.xpose.msra.mxu0 %v1020
        %1024 = vmatprep.subr.bf16.mxu0 0
        %1025 = vmatpush1.bf16.xpose.msra.mxu0 0
        %1026 = vmatprep.subr.bf16.mxu0 0
        %1027 = vmatpush1.bf16.xpose.msra.mxu0 0
        %1028 = vmatprep.subr.bf16.mxu0 0
        %1029 = vmatpush1.bf16.xpose.msra.mxu0 0
        %1030 = vmatprep.subr.bf16.mxu0 0
        %1031 = vmatpush1.bf16.xpose.msra.mxu0 0
        %1032 = vmatprep.subr.bf16.mxu0 0
        %1033 = vmatpush1.bf16.xpose.msra.mxu0 0
        %1034 = vmatprep.subr.bf16.mxu0 0
        %1035 = vmatpush1.bf16.xpose.msra.mxu0 0
        %1036 = vmatprep.subr.bf16.mxu0 0
        %1037 = vmatpush1.bf16.xpose.msra.mxu0 0
        %1038 = vmatprep.subr.bf16.mxu0 0
        %1039 = vmatpush1.bf16.xpose.msra.mxu0 0
        %1040 = vmatprep.subr.bf16.mxu0 0
        %1041 = vmatpush1.bf16.xpose.msra.mxu0 0
        %1042 = vmatprep.subr.bf16.mxu0 0
        %1043 = vmatpush1.bf16.xpose.msra.mxu0 0
        %1044 = vmatprep.subr.bf16.mxu0 0
        %1045 = vmatpush1.bf16.xpose.msra.mxu0 0
        %1046 = vmatprep.subr.bf16.mxu0 0
        %1047 = vmatpush1.bf16.xpose.msra.mxu0 0
        %1048 = vmatprep.subr.bf16.mxu0 0
        %1049 = vmatpush1.bf16.xpose.msra.mxu0 0
        %1050 = vmatprep.subr.bf16.mxu0 0
        %1051 = vmatpush1.bf16.xpose.msra.mxu0 0
        %1052 = vmatprep.subr.bf16.mxu0 0
        %1053 = vmatpush1.bf16.xpose.msra.mxu0 0
        %1054 = vmatprep.mubr.bf16.mxu0 0
        %1055 = vmatmul.mubr.bf16.gmra.mrb[0].mxu0 %v1017
        %v1056 = vpop.f32.mrb[0].mxu0
        %v1057 = vadd.f32 0.0, %v1056
        %v1058 = vpop.f32.mrb[0].mxu0
        %v1059 = vpop.f32.mrb[0].mxu0
        %v1060 = vadd.f32 0.0, %v1059
        %v1061 = vpop.f32.mrb[0].mxu0
        %1062 = vdwg.mxu0
        %v1063 = vsel %vm802, %v1057, -inf
        %1064 = vmax.xlane.f32.xlu0 %v1063
        %v1065 = vpop.xlane.xlu0 %1064
        %v1066 = vsel %vm802, %v1060, -inf
        %1067 = vmax.xlane.f32.xlu0 %v1066
        %v1068 = vpop.xlane.xlu0 %1067
        %v1069 = vsub.f32 %v1057, %v1065
        %v1070 = vsub.f32 %v1060, %v1068
        %v1071 = vmul.f32 %v1069, 1.442695
        %v1072 = vpow.pop %v1071
        %v1073 = vmul.f32 %v1070, 1.442695
        %v1074 = vpow.pop %v1073
        %v1075 = vsel %vm802, %v1072, 0.0
        %1076 = vadd.xlane.f32.xlu0 %v1075
        %v1077 = vpop.xlane.xlu0 %1076
        %v1078 = vsel %vm802, %v1074, 0.0
        %1079 = vadd.xlane.f32.xlu0 %v1078
        %v1080 = vpop.xlane.xlu0 %1079
        %v1081 = vrcp.pop %v1077
        %v1082 = vrcp.pop %v1080
        %v1083 = vmul.f32 %v1072, %v1081
        %v1084 = vmul.f32 %v1074, %v1082
        %s1085 = scalar_lea.vmem %s500, 32 [#allocation13]
        %1086 = vst.msk [vmem:[%s1085] sm:$0xff] %vm802, %v1083
        %1087 = vst.msk [vmem:[%s1085 + $0x8] sm:$0xff] %vm802, %v1084
        %v1088 = vpack.c.bf16 %v1084, %v1083
        %1089 = vrot.lane.b32.xlu0 %v753, 64
        %v1090 = vpop.permute.xlu0 %1089
        %v1093 = vsel %vm802, %v1088, 0
        %1095 = vmatprep.subr.bf16.mxu0 0
        %1096 = vmatpush1.bf16.msra.mxu0 %v1090
        %1097 = vmatprep.subr.bf16.mxu0 0
        %1098 = vmatpush1.bf16.msra.mxu0 0
        %1099 = vmatprep.subr.bf16.mxu0 0
        %1100 = vmatpush1.bf16.msra.mxu0 0
        %1101 = vmatprep.subr.bf16.mxu0 0
        %1102 = vmatpush1.bf16.msra.mxu0 0
        %1103 = vmatprep.subr.bf16.mxu0 0
        %1104 = vmatpush1.bf16.msra.mxu0 0
        %1105 = vmatprep.subr.bf16.mxu0 0
        %1106 = vmatpush1.bf16.msra.mxu0 0
        %1107 = vmatprep.subr.bf16.mxu0 0
        %1108 = vmatpush1.bf16.msra.mxu0 0
        %1109 = vmatprep.subr.bf16.mxu0 0
        %1110 = vmatpush1.bf16.msra.mxu0 0
        %1111 = vmatprep.subr.bf16.mxu0 0
        %1112 = vmatpush1.bf16.msra.mxu0 0
        %1113 = vmatprep.subr.bf16.mxu0 0
        %1114 = vmatpush1.bf16.msra.mxu0 0
        %1115 = vmatprep.subr.bf16.mxu0 0
        %1116 = vmatpush1.bf16.msra.mxu0 0
        %1117 = vmatprep.subr.bf16.mxu0 0
        %1118 = vmatpush1.bf16.msra.mxu0 0
        %1119 = vmatprep.subr.bf16.mxu0 0
        %1120 = vmatpush1.bf16.msra.mxu0 0
        %1121 = vmatprep.subr.bf16.mxu0 0
        %1122 = vmatpush1.bf16.msra.mxu0 0
        %1123 = vmatprep.subr.bf16.mxu0 0
        %1124 = vmatpush1.bf16.msra.mxu0 0
        %1125 = vmatprep.subr.bf16.mxu0 0
        %1126 = vmatpush1.bf16.msra.mxu0 0
        %1127 = vmatprep.mubr.bf16.mxu0 0
        %1128 = vmatmul.mubr.bf16.gmra.mrb[0].mxu0 %v1093
        %v1129 = vpop.f32.mrb[0].mxu0
        %v1130 = vadd.f32 0.0, %v1129
        %v1131 = vpop.f32.mrb[0].mxu0
        %v1132 = vpop.f32.mrb[0].mxu0
        %v1133 = vadd.f32 0.0, %v1132
        %v1134 = vpop.f32.mrb[0].mxu0
        %1135 = vdwg.mxu0
        %1138 = vrot.lane.b32.xlu0 %v1130, 64
        %v1139 = vpop.permute.xlu0 %1138
        %1140 = vrot.lane.b32.xlu0 %v1133, 64
        %v1141 = vpop.permute.xlu0 %1140
        %vm1144 = vcmask 785920
        %1145 = vst.msk [vmem:[#allocation2] sm:$0xff] %vm1144, %v1139
        %1146 = vst.msk [vmem:[#allocation2 + $0x8] sm:$0xff] %vm1144, %v1141
        %1147 = vrot.lane.b32.xlu0 %v751, 32
        %v1148 = vpop.permute.xlu0 %1147
        %1149 = vrot.lane.b32.xlu0 %v752, 32
        %v1150 = vpop.permute.xlu0 %1149
        %v1152 = vsel %vm754, %v1148, 0
        %v1155 = vsel %vm754, %v1150, 0
        %1157 = vmatprep.subr.bf16.mxu0 0
        %1158 = vmatpush1.bf16.xpose.msra.mxu0 %v1155
        %1159 = vmatprep.subr.bf16.mxu0 0
        %1160 = vmatpush1.bf16.xpose.msra.mxu0 0
        %1161 = vmatprep.subr.bf16.mxu0 0
        %1162 = vmatpush1.bf16.xpose.msra.mxu0 0
        %1163 = vmatprep.subr.bf16.mxu0 0
        %1164 = vmatpush1.bf16.xpose.msra.mxu0 0
        %1165 = vmatprep.subr.bf16.mxu0 0
        %1166 = vmatpush1.bf16.xpose.msra.mxu0 0
        %1167 = vmatprep.subr.bf16.mxu0 0
        %1168 = vmatpush1.bf16.xpose.msra.mxu0 0
        %1169 = vmatprep.subr.bf16.mxu0 0
        %1170 = vmatpush1.bf16.xpose.msra.mxu0 0
        %1171 = vmatprep.subr.bf16.mxu0 0
        %1172 = vmatpush1.bf16.xpose.msra.mxu0 0
        %1173 = vmatprep.subr.bf16.mxu0 0
        %1174 = vmatpush1.bf16.xpose.msra.mxu0 0
        %1175 = vmatprep.subr.bf16.mxu0 0
        %1176 = vmatpush1.bf16.xpose.msra.mxu0 0
        %1177 = vmatprep.subr.bf16.mxu0 0
        %1178 = vmatpush1.bf16.xpose.msra.mxu0 0
        %1179 = vmatprep.subr.bf16.mxu0 0
        %1180 = vmatpush1.bf16.xpose.msra.mxu0 0
        %1181 = vmatprep.subr.bf16.mxu0 0
        %1182 = vmatpush1.bf16.xpose.msra.mxu0 0
        %1183 = vmatprep.subr.bf16.mxu0 0
        %1184 = vmatpush1.bf16.xpose.msra.mxu0 0
        %1185 = vmatprep.subr.bf16.mxu0 0
        %1186 = vmatpush1.bf16.xpose.msra.mxu0 0
        %1187 = vmatprep.subr.bf16.mxu0 0
        %1188 = vmatpush1.bf16.xpose.msra.mxu0 0
        %1189 = vmatprep.mubr.bf16.mxu0 0
        %1190 = vmatmul.mubr.bf16.gmra.mrb[0].mxu0 %v1152
        %v1191 = vpop.f32.mrb[0].mxu0
        %v1192 = vadd.f32 0.0, %v1191
        %v1193 = vpop.f32.mrb[0].mxu0
        %v1194 = vpop.f32.mrb[0].mxu0
        %v1195 = vadd.f32 0.0, %v1194
        %v1196 = vpop.f32.mrb[0].mxu0
        %1197 = vdwg.mxu0
        %v1198 = vsel %vm802, %v1192, -inf
        %1199 = vmax.xlane.f32.xlu0 %v1198
        %v1200 = vpop.xlane.xlu0 %1199
        %v1201 = vsel %vm802, %v1195, -inf
        %1202 = vmax.xlane.f32.xlu0 %v1201
        %v1203 = vpop.xlane.xlu0 %1202
        %v1204 = vsub.f32 %v1192, %v1200
        %v1205 = vsub.f32 %v1195, %v1203
        %v1206 = vmul.f32 %v1204, 1.442695
        %v1207 = vpow.pop %v1206
        %v1208 = vmul.f32 %v1205, 1.442695
        %v1209 = vpow.pop %v1208
        %v1210 = vsel %vm802, %v1207, 0.0
        %1211 = vadd.xlane.f32.xlu0 %v1210
        %v1212 = vpop.xlane.xlu0 %1211
        %v1213 = vsel %vm802, %v1209, 0.0
        %1214 = vadd.xlane.f32.xlu0 %v1213
        %v1215 = vpop.xlane.xlu0 %1214
        %v1216 = vrcp.pop %v1212
        %v1217 = vrcp.pop %v1215
        %v1218 = vmul.f32 %v1207, %v1216
        %v1219 = vmul.f32 %v1209, %v1217
        %s1220 = scalar_lea.vmem %s500, 48 [#allocation13]
        %1221 = vst.msk [vmem:[%s1220] sm:$0xff] %vm802, %v1218
        %1222 = vst.msk [vmem:[%s1220 + $0x8] sm:$0xff] %vm802, %v1219
        %v1223 = vpack.c.bf16 %v1219, %v1218
        %1224 = vrot.lane.b32.xlu0 %v753, 32
        %v1225 = vpop.permute.xlu0 %1224
        %v1228 = vsel %vm802, %v1223, 0
        %1230 = vmatprep.subr.bf16.mxu0 0
        %1231 = vmatpush1.bf16.msra.mxu0 %v1225
        %1232 = vmatprep.subr.bf16.mxu0 0
        %1233 = vmatpush1.bf16.msra.mxu0 0
        %1234 = vmatprep.subr.bf16.mxu0 0
        %1235 = vmatpush1.bf16.msra.mxu0 0
        %1236 = vmatprep.subr.bf16.mxu0 0
        %1237 = vmatpush1.bf16.msra.mxu0 0
        %1238 = vmatprep.subr.bf16.mxu0 0
        %1239 = vmatpush1.bf16.msra.mxu0 0
        %1240 = vmatprep.subr.bf16.mxu0 0
        %1241 = vmatpush1.bf16.msra.mxu0 0
        %1242 = vmatprep.subr.bf16.mxu0 0
        %1243 = vmatpush1.bf16.msra.mxu0 0
        %1244 = vmatprep.subr.bf16.mxu0 0
        %1245 = vmatpush1.bf16.msra.mxu0 0
        %1246 = vmatprep.subr.bf16.mxu0 0
        %1247 = vmatpush1.bf16.msra.mxu0 0
        %1248 = vmatprep.subr.bf16.mxu0 0
        %1249 = vmatpush1.bf16.msra.mxu0 0
        %1250 = vmatprep.subr.bf16.mxu0 0
        %1251 = vmatpush1.bf16.msra.mxu0 0
        %1252 = vmatprep.subr.bf16.mxu0 0
        %1253 = vmatpush1.bf16.msra.mxu0 0
        %1254 = vmatprep.subr.bf16.mxu0 0
        %1255 = vmatpush1.bf16.msra.mxu0 0
        %1256 = vmatprep.subr.bf16.mxu0 0
        %1257 = vmatpush1.bf16.msra.mxu0 0
        %1258 = vmatprep.subr.bf16.mxu0 0
        %1259 = vmatpush1.bf16.msra.mxu0 0
        %1260 = vmatprep.subr.bf16.mxu0 0
        %1261 = vmatpush1.bf16.msra.mxu0 0
        %1262 = vmatprep.mubr.bf16.mxu0 0
        %1263 = vmatmul.mubr.bf16.gmra.mrb[0].mxu0 %v1228
        %v1264 = vpop.f32.mrb[0].mxu0
        %v1265 = vadd.f32 0.0, %v1264
        %v1266 = vpop.f32.mrb[0].mxu0
        %v1267 = vpop.f32.mrb[0].mxu0
        %v1268 = vadd.f32 0.0, %v1267
        %v1269 = vpop.f32.mrb[0].mxu0
        %1270 = vdwg.mxu0
        %1273 = vrot.lane.b32.xlu0 %v1265, 96
        %v1274 = vpop.permute.xlu0 %1273
        %1275 = vrot.lane.b32.xlu0 %v1268, 96
        %v1276 = vpop.permute.xlu0 %1275
        %vm1279 = vcmask 1048320
        %1280 = vst.msk [vmem:[#allocation2] sm:$0xff] %vm1279, %v1274
        %1281 = vst.msk [vmem:[#allocation2 + $0x8] sm:$0xff] %vm1279, %v1276
        %v1282 = vld [vmem:[#allocation2] sm:$0xff]
        %v1283 = vld [vmem:[#allocation2 + $0x8] sm:$0xff]
        %v1284 = vpack.c.bf16 %v1283, %v1282
        %v1285 = vld [vmem:[#allocation8] sm:$0xf]
        %v1286 = vld [vmem:[#allocation8 + $0x4] sm:$0xf]
        %v1287 = vld [vmem:[#allocation8 + $0x8] sm:$0xf]
        %v1288 = vld [vmem:[#allocation8 + $0xc] sm:$0xf]
        %v1289 = vld [vmem:[#allocation8 + $0x10] sm:$0xf]
        %v1290 = vld [vmem:[#allocation8 + $0x14] sm:$0xf]
        %v1291 = vld [vmem:[#allocation8 + $0x18] sm:$0xf]
        %v1292 = vld [vmem:[#allocation8 + $0x1c] sm:$0xf]
        %v1293 = vld [vmem:[#allocation8 + $0x20] sm:$0xf]
        %v1294 = vld [vmem:[#allocation8 + $0x24] sm:$0xf]
        %v1295 = vld [vmem:[#allocation8 + $0x28] sm:$0xf]
        %v1296 = vld [vmem:[#allocation8 + $0x2c] sm:$0xf]
        %v1297 = vld [vmem:[#allocation8 + $0x30] sm:$0xf]
        %v1298 = vld [vmem:[#allocation8 + $0x34] sm:$0xf]
        %v1299 = vld [vmem:[#allocation8 + $0x38] sm:$0xf]
        %v1300 = vld [vmem:[#allocation8 + $0x3c] sm:$0xf]
        %v1317 = vunpack.c.l.b16 %v1285
        %v1318 = vunpack.c.l.b16 %v1286
        %v1319 = vunpack.c.l.b16 %v1287
        %v1320 = vunpack.c.l.b16 %v1288
        %v1321 = vunpack.c.l.b16 %v1289
        %v1322 = vunpack.c.l.b16 %v1290
        %v1323 = vunpack.c.l.b16 %v1291
        %v1324 = vunpack.c.l.b16 %v1292
        %v1325 = vunpack.c.l.b16 %v1293
        %v1326 = vunpack.c.l.b16 %v1294
        %v1327 = vunpack.c.l.b16 %v1295
        %v1328 = vunpack.c.l.b16 %v1296
        %v1329 = vunpack.c.l.b16 %v1297
        %v1330 = vunpack.c.l.b16 %v1298
        %v1331 = vunpack.c.l.b16 %v1299
        %v1332 = vunpack.c.l.b16 %v1300
        %v1333 = vpack.c.b16 %v1318, %v1317
        %v1334 = vpack.c.b16 %v1320, %v1319
        %v1335 = vpack.c.b16 %v1322, %v1321
        %v1336 = vpack.c.b16 %v1324, %v1323
        %v1337 = vpack.c.b16 %v1326, %v1325
        %v1338 = vpack.c.b16 %v1328, %v1327
        %v1339 = vpack.c.b16 %v1330, %v1329
        %v1340 = vpack.c.b16 %v1332, %v1331
        %1349 = vmatprep.subr.bf16.mxu0 0
        %1350 = vmatpush1.bf16.msra.mxu0 %v1333
        %1351 = vmatprep.subr.bf16.mxu0 0
        %1352 = vmatpush1.bf16.msra.mxu0 %v1334
        %1353 = vmatprep.subr.bf16.mxu0 0
        %1354 = vmatpush1.bf16.msra.mxu0 %v1335
        %1355 = vmatprep.subr.bf16.mxu0 0
        %1356 = vmatpush1.bf16.msra.mxu0 %v1336
        %1357 = vmatprep.subr.bf16.mxu0 0
        %1358 = vmatpush1.bf16.msra.mxu0 %v1337
        %1359 = vmatprep.subr.bf16.mxu0 0
        %1360 = vmatpush1.bf16.msra.mxu0 %v1338
        %1361 = vmatprep.subr.bf16.mxu0 0
        %1362 = vmatpush1.bf16.msra.mxu0 %v1339
        %1363 = vmatprep.subr.bf16.mxu0 0
        %1364 = vmatpush1.bf16.msra.mxu0 %v1340
        %1365 = vmatprep.subr.bf16.mxu0 0
        %1366 = vmatpush1.bf16.msra.mxu0 0
        %1367 = vmatprep.subr.bf16.mxu0 0
        %1368 = vmatpush1.bf16.msra.mxu0 0
        %1369 = vmatprep.subr.bf16.mxu0 0
        %1370 = vmatpush1.bf16.msra.mxu0 0
        %1371 = vmatprep.subr.bf16.mxu0 0
        %1372 = vmatpush1.bf16.msra.mxu0 0
        %1373 = vmatprep.subr.bf16.mxu0 0
        %1374 = vmatpush1.bf16.msra.mxu0 0
        %1375 = vmatprep.subr.bf16.mxu0 0
        %1376 = vmatpush1.bf16.msra.mxu0 0
        %1377 = vmatprep.subr.bf16.mxu0 0
        %1378 = vmatpush1.bf16.msra.mxu0 0
        %1379 = vmatprep.subr.bf16.mxu0 0
        %1380 = vmatpush1.bf16.msra.mxu0 0
        %1381 = vmatprep.mubr.bf16.mxu0 0
        %1382 = vmatmul.mubr.bf16.gmra.mrb[0].mxu0 %v1284
        %v1383 = vpop.f32.mrb[0].mxu0
        %v1384 = vadd.f32 %v502, %v1383
        %v1385 = vpop.f32.mrb[0].mxu0
        %v1386 = vpop.f32.mrb[0].mxu0
        %v1387 = vadd.f32 %v503, %v1386
        %v1388 = vpop.f32.mrb[0].mxu0
        %1389 = vdwg.mxu0
        %v1390 = vld [vmem:[%s3] sm:$0x1]
        %v1391 = vld [vmem:[%s4] sm:$0x1]
        %1392 = vadd.xlane.f32.xlu0 %v1384
        %v1393 = vpop.xlane.xlu0 %1392
        %1394 = vadd.xlane.f32.xlu0 %v1387
        %v1395 = vpop.xlane.xlu0 %1394
        %v1396 = vrcp.pop 128.0
        %v1397 = vmul.f32 %v1393, %v1396
        %v1398 = vmul.f32 %v1395, %v1396
        %v1399 = vsub.f32 %v1384, %v1397
        %v1400 = vsub.f32 %v1387, %v1398
        %v1401 = vmul.f32 %v1399, %v1399
        %v1402 = vmul.f32 %v1400, %v1400
        %1403 = vadd.xlane.f32.xlu0 %v1401
        %v1404 = vpop.xlane.xlu0 %1403
        %1405 = vadd.xlane.f32.xlu0 %v1402
        %v1406 = vpop.xlane.xlu0 %1405
        %v1407 = vmul.f32 %v1404, %v1396
        %v1408 = vmul.f32 %v1406, %v1396
        %v1409 = vadd.f32 %v1407, 1e-06
        %v1410 = vadd.f32 %v1408, 1e-06
        %v1411 = vrsqrt.pop %v1409
        %v1412 = vrsqrt.pop %v1410
        %v1413 = vmul.f32 %v1399, %v1411
        %v1414 = vmul.f32 %v1400, %v1412
        %v1416 = vlaneseq
        %v1417 = vshrl.u32 %v1416, 7
        %v1418 = vsub.s32 0, %v1417
        %v1419 = vrot.slane %v1390, %v1418
        %v1421 = vmul.f32 %v1413, %v1419
        %v1422 = vmul.f32 %v1414, %v1419
        %v1424 = vlaneseq
        %v1425 = vshrl.u32 %v1424, 7
        %v1426 = vsub.s32 0, %v1425
        %v1427 = vrot.slane %v1391, %v1426
        %v1429 = vadd.f32 %v1421, %v1427
        %v1430 = vadd.f32 %v1422, %v1427
        %v1431 = vpack.c.bf16 %v1430, %v1429
        %v1432 = vld [vmem:[#allocation9] sm:$0xff]
        %v1433 = vld [vmem:[#allocation9 + $0x8] sm:$0xff]
        %v1434 = vld [vmem:[#allocation9 + $0x10] sm:$0xff]
        %v1435 = vld [vmem:[#allocation9 + $0x18] sm:$0xff]
        %v1436 = vld [vmem:[#allocation9 + $0x20] sm:$0xff]
        %v1437 = vld [vmem:[#allocation9 + $0x28] sm:$0xff]
        %v1438 = vld [vmem:[#allocation9 + $0x30] sm:$0xff]
        %v1439 = vld [vmem:[#allocation9 + $0x38] sm:$0xff]
        %v1440 = vld [vmem:[#allocation9 + $0x40] sm:$0xff]
        %v1441 = vld [vmem:[#allocation9 + $0x48] sm:$0xff]
        %v1442 = vld [vmem:[#allocation9 + $0x50] sm:$0xff]
        %v1443 = vld [vmem:[#allocation9 + $0x58] sm:$0xff]
        %v1444 = vld [vmem:[#allocation9 + $0x60] sm:$0xff]
        %v1445 = vld [vmem:[#allocation9 + $0x68] sm:$0xff]
        %v1446 = vld [vmem:[#allocation9 + $0x70] sm:$0xff]
        %v1447 = vld [vmem:[#allocation9 + $0x78] sm:$0xff]
        %v1448 = vld [vmem:[%s6] sm:$0x3]
        %v1450 = vlaneseq
        %v1451 = vshrl.u32 %v1450, 7
        %v1452 = vsub.s32 0, %v1451
        %v1453 = vrot.slane %v1448, %v1452
        %v1454 = vlaneseq
        %v1455 = vshrl.u32 %v1454, 7
        %v1456 = vsub.s32 1, %v1455
        %v1457 = vrot.slane %v1448, %v1456
        %v1476 = vunpack.c.l.b16 %v1432
        %v1477 = vunpack.c.h.b16 %v1432
        %v1478 = vunpack.c.l.b16 %v1433
        %v1479 = vunpack.c.h.b16 %v1433
        %v1480 = vunpack.c.l.b16 %v1434
        %v1481 = vunpack.c.h.b16 %v1434
        %v1482 = vunpack.c.l.b16 %v1435
        %v1483 = vunpack.c.h.b16 %v1435
        %v1484 = vunpack.c.l.b16 %v1436
        %v1485 = vunpack.c.h.b16 %v1436
        %v1486 = vunpack.c.l.b16 %v1437
        %v1487 = vunpack.c.h.b16 %v1437
        %v1488 = vunpack.c.l.b16 %v1438
        %v1489 = vunpack.c.h.b16 %v1438
        %v1490 = vunpack.c.l.b16 %v1439
        %v1491 = vunpack.c.h.b16 %v1439
        %v1492 = vunpack.c.l.b16 %v1440
        %v1493 = vunpack.c.h.b16 %v1440
        %v1494 = vunpack.c.l.b16 %v1441
        %v1495 = vunpack.c.h.b16 %v1441
        %v1496 = vunpack.c.l.b16 %v1442
        %v1497 = vunpack.c.h.b16 %v1442
        %v1498 = vunpack.c.l.b16 %v1443
        %v1499 = vunpack.c.h.b16 %v1443
        %v1500 = vunpack.c.l.b16 %v1444
        %v1501 = vunpack.c.h.b16 %v1444
        %v1502 = vunpack.c.l.b16 %v1445
        %v1503 = vunpack.c.h.b16 %v1445
        %v1504 = vunpack.c.l.b16 %v1446
        %v1505 = vunpack.c.h.b16 %v1446
        %v1506 = vunpack.c.l.b16 %v1447
        %v1507 = vunpack.c.h.b16 %v1447
        %v1508 = vpack.c.b16 %v1478, %v1476
        %v1509 = vpack.c.b16 %v1479, %v1477
        %v1510 = vpack.c.b16 %v1482, %v1480
        %v1511 = vpack.c.b16 %v1483, %v1481
        %v1512 = vpack.c.b16 %v1486, %v1484
        %v1513 = vpack.c.b16 %v1487, %v1485
        %v1514 = vpack.c.b16 %v1490, %v1488
        %v1515 = vpack.c.b16 %v1491, %v1489
        %v1516 = vpack.c.b16 %v1494, %v1492
        %v1517 = vpack.c.b16 %v1495, %v1493
        %v1518 = vpack.c.b16 %v1498, %v1496
        %v1519 = vpack.c.b16 %v1499, %v1497
        %v1520 = vpack.c.b16 %v1502, %v1500
        %v1521 = vpack.c.b16 %v1503, %v1501
        %v1522 = vpack.c.b16 %v1506, %v1504
        %v1523 = vpack.c.b16 %v1507, %v1505
        %1540 = vmatprep.subr.bf16.mxu0 %v1509
        %1541 = vmatpush1.bf16.msra.mxu0 %v1508
        %1542 = vmatprep.subr.bf16.mxu0 %v1511
        %1543 = vmatpush1.bf16.msra.mxu0 %v1510
        %1544 = vmatprep.subr.bf16.mxu0 %v1513
        %1545 = vmatpush1.bf16.msra.mxu0 %v1512
        %1546 = vmatprep.subr.bf16.mxu0 %v1515
        %1547 = vmatpush1.bf16.msra.mxu0 %v1514
        %1548 = vmatprep.subr.bf16.mxu0 %v1517
        %1549 = vmatpush1.bf16.msra.mxu0 %v1516
        %1550 = vmatprep.subr.bf16.mxu0 %v1519
        %1551 = vmatpush1.bf16.msra.mxu0 %v1518
        %1552 = vmatprep.subr.bf16.mxu0 %v1521
        %1553 = vmatpush1.bf16.msra.mxu0 %v1520
        %1554 = vmatprep.subr.bf16.mxu0 %v1523
        %1555 = vmatpush1.bf16.msra.mxu0 %v1522
        %1556 = vmatprep.subr.bf16.mxu0 0
        %1557 = vmatpush1.bf16.msra.mxu0 0
        %1558 = vmatprep.subr.bf16.mxu0 0
        %1559 = vmatpush1.bf16.msra.mxu0 0
        %1560 = vmatprep.subr.bf16.mxu0 0
        %1561 = vmatpush1.bf16.msra.mxu0 0
        %1562 = vmatprep.subr.bf16.mxu0 0
        %1563 = vmatpush1.bf16.msra.mxu0 0
        %1564 = vmatprep.subr.bf16.mxu0 0
        %1565 = vmatpush1.bf16.msra.mxu0 0
        %1566 = vmatprep.subr.bf16.mxu0 0
        %1567 = vmatpush1.bf16.msra.mxu0 0
        %1568 = vmatprep.subr.bf16.mxu0 0
        %1569 = vmatpush1.bf16.msra.mxu0 0
        %1570 = vmatprep.subr.bf16.mxu0 0
        %1571 = vmatpush1.bf16.msra.mxu0 0
        %1572 = vmatprep.mubr.bf16.mxu0 0
        %1573 = vmatmul.mubr.bf16.gmra.mrb[0].mxu0 %v1431
        %v1574 = vpop.f32.mrb[0].mxu0
        %v1575 = vadd.f32 %v1453, %v1574
        %v1576 = vpop.f32.mrb[0].mxu0
        %v1577 = vadd.f32 %v1457, %v1576
        %v1578 = vpop.f32.mrb[0].mxu0
        %v1579 = vadd.f32 %v1453, %v1578
        %v1580 = vpop.f32.mrb[0].mxu0
        %v1581 = vadd.f32 %v1457, %v1580
        %1582 = vdwg.mxu0
        %v1583 = vmax.f32 %v1575, 0.0
        %v1584 = vmax.f32 %v1577, 0.0
        %v1585 = vmax.f32 %v1579, 0.0
        %v1586 = vmax.f32 %v1581, 0.0
        %v1587 = vpack.c.bf16 %v1585, %v1583
        %v1588 = vpack.c.bf16 %v1586, %v1584
        %v1589 = vld [vmem:[#allocation11] sm:$0xf]
        %v1590 = vld [vmem:[#allocation11 + $0x4] sm:$0xf]
        %v1591 = vld [vmem:[#allocation11 + $0x8] sm:$0xf]
        %v1592 = vld [vmem:[#allocation11 + $0xc] sm:$0xf]
        %v1593 = vld [vmem:[#allocation11 + $0x10] sm:$0xf]
        %v1594 = vld [vmem:[#allocation11 + $0x14] sm:$0xf]
        %v1595 = vld [vmem:[#allocation11 + $0x18] sm:$0xf]
        %v1596 = vld [vmem:[#allocation11 + $0x1c] sm:$0xf]
        %v1597 = vld [vmem:[#allocation11 + $0x20] sm:$0xf]
        %v1598 = vld [vmem:[#allocation11 + $0x24] sm:$0xf]
        %v1599 = vld [vmem:[#allocation11 + $0x28] sm:$0xf]
        %v1600 = vld [vmem:[#allocation11 + $0x2c] sm:$0xf]
        %v1601 = vld [vmem:[#allocation11 + $0x30] sm:$0xf]
        %v1602 = vld [vmem:[#allocation11 + $0x34] sm:$0xf]
        %v1603 = vld [vmem:[#allocation11 + $0x38] sm:$0xf]
        %v1604 = vld [vmem:[#allocation11 + $0x3c] sm:$0xf]
        %v1605 = vld [vmem:[#allocation11 + $0x40] sm:$0xf]
        %v1606 = vld [vmem:[#allocation11 + $0x44] sm:$0xf]
        %v1607 = vld [vmem:[#allocation11 + $0x48] sm:$0xf]
        %v1608 = vld [vmem:[#allocation11 + $0x4c] sm:$0xf]
        %v1609 = vld [vmem:[#allocation11 + $0x50] sm:$0xf]
        %v1610 = vld [vmem:[#allocation11 + $0x54] sm:$0xf]
        %v1611 = vld [vmem:[#allocation11 + $0x58] sm:$0xf]
        %v1612 = vld [vmem:[#allocation11 + $0x5c] sm:$0xf]
        %v1613 = vld [vmem:[#allocation11 + $0x60] sm:$0xf]
        %v1614 = vld [vmem:[#allocation11 + $0x64] sm:$0xf]
        %v1615 = vld [vmem:[#allocation11 + $0x68] sm:$0xf]
        %v1616 = vld [vmem:[#allocation11 + $0x6c] sm:$0xf]
        %v1617 = vld [vmem:[#allocation11 + $0x70] sm:$0xf]
        %v1618 = vld [vmem:[#allocation11 + $0x74] sm:$0xf]
        %v1619 = vld [vmem:[#allocation11 + $0x78] sm:$0xf]
        %v1620 = vld [vmem:[#allocation11 + $0x7c] sm:$0xf]
        %v1621 = vld [vmem:[%s8] sm:$0x1]
        %v1623 = vlaneseq
        %v1624 = vshrl.u32 %v1623, 7
        %v1625 = vsub.s32 0, %v1624
        %v1626 = vrot.slane %v1621, %v1625
        %v1660 = vunpack.c.l.b16 %v1589
        %v1661 = vunpack.c.l.b16 %v1590
        %v1662 = vunpack.c.l.b16 %v1591
        %v1663 = vunpack.c.l.b16 %v1592
        %v1664 = vunpack.c.l.b16 %v1593
        %v1665 = vunpack.c.l.b16 %v1594
        %v1666 = vunpack.c.l.b16 %v1595
        %v1667 = vunpack.c.l.b16 %v1596
        %v1668 = vunpack.c.l.b16 %v1597
        %v1669 = vunpack.c.l.b16 %v1598
        %v1670 = vunpack.c.l.b16 %v1599
        %v1671 = vunpack.c.l.b16 %v1600
        %v1672 = vunpack.c.l.b16 %v1601
        %v1673 = vunpack.c.l.b16 %v1602
        %v1674 = vunpack.c.l.b16 %v1603
        %v1675 = vunpack.c.l.b16 %v1604
        %v1676 = vunpack.c.l.b16 %v1605
        %v1677 = vunpack.c.l.b16 %v1606
        %v1678 = vunpack.c.l.b16 %v1607
        %v1679 = vunpack.c.l.b16 %v1608
        %v1680 = vunpack.c.l.b16 %v1609
        %v1681 = vunpack.c.l.b16 %v1610
        %v1682 = vunpack.c.l.b16 %v1611
        %v1683 = vunpack.c.l.b16 %v1612
        %v1684 = vunpack.c.l.b16 %v1613
        %v1685 = vunpack.c.l.b16 %v1614
        %v1686 = vunpack.c.l.b16 %v1615
        %v1687 = vunpack.c.l.b16 %v1616
        %v1688 = vunpack.c.l.b16 %v1617
        %v1689 = vunpack.c.l.b16 %v1618
        %v1690 = vunpack.c.l.b16 %v1619
        %v1691 = vunpack.c.l.b16 %v1620
        %v1692 = vpack.c.b16 %v1661, %v1660
        %v1693 = vpack.c.b16 %v1663, %v1662
        %v1694 = vpack.c.b16 %v1665, %v1664
        %v1695 = vpack.c.b16 %v1667, %v1666
        %v1696 = vpack.c.b16 %v1669, %v1668
        %v1697 = vpack.c.b16 %v1671, %v1670
        %v1698 = vpack.c.b16 %v1673, %v1672
        %v1699 = vpack.c.b16 %v1675, %v1674
        %v1700 = vpack.c.b16 %v1677, %v1676
        %v1701 = vpack.c.b16 %v1679, %v1678
        %v1702 = vpack.c.b16 %v1681, %v1680
        %v1703 = vpack.c.b16 %v1683, %v1682
        %v1704 = vpack.c.b16 %v1685, %v1684
        %v1705 = vpack.c.b16 %v1687, %v1686
        %v1706 = vpack.c.b16 %v1689, %v1688
        %v1707 = vpack.c.b16 %v1691, %v1690
        %1724 = vmatprep.subr.bf16.mxu0 0
        %1725 = vmatpush1.bf16.msra.mxu0 %v1692
        %1726 = vmatprep.subr.bf16.mxu0 0
        %1727 = vmatpush1.bf16.msra.mxu0 %v1693
        %1728 = vmatprep.subr.bf16.mxu0 0
        %1729 = vmatpush1.bf16.msra.mxu0 %v1694
        %1730 = vmatprep.subr.bf16.mxu0 0
        %1731 = vmatpush1.bf16.msra.mxu0 %v1695
        %1732 = vmatprep.subr.bf16.mxu0 0
        %1733 = vmatpush1.bf16.msra.mxu0 %v1696
        %1734 = vmatprep.subr.bf16.mxu0 0
        %1735 = vmatpush1.bf16.msra.mxu0 %v1697
        %1736 = vmatprep.subr.bf16.mxu0 0
        %1737 = vmatpush1.bf16.msra.mxu0 %v1698
        %1738 = vmatprep.subr.bf16.mxu0 0
        %1739 = vmatpush1.bf16.msra.mxu0 %v1699
        %1740 = vmatprep.subr.bf16.mxu0 0
        %1741 = vmatpush1.bf16.msra.mxu0 %v1700
        %1742 = vmatprep.subr.bf16.mxu0 0
        %1743 = vmatpush1.bf16.msra.mxu0 %v1701
        %1744 = vmatprep.subr.bf16.mxu0 0
        %1745 = vmatpush1.bf16.msra.mxu0 %v1702
        %1746 = vmatprep.subr.bf16.mxu0 0
        %1747 = vmatpush1.bf16.msra.mxu0 %v1703
        %1748 = vmatprep.subr.bf16.mxu0 0
        %1749 = vmatpush1.bf16.msra.mxu0 %v1704
        %1750 = vmatprep.subr.bf16.mxu0 0
        %1751 = vmatpush1.bf16.msra.mxu0 %v1705
        %1752 = vmatprep.subr.bf16.mxu0 0
        %1753 = vmatpush1.bf16.msra.mxu0 %v1706
        %1754 = vmatprep.subr.bf16.mxu0 0
        %1755 = vmatpush1.bf16.msra.mxu0 %v1707
        %1756 = vmatprep.mubr.bf16.mxu0 %v1588
        %1757 = vmatmul.mubr.bf16.gmra.mrb[0].mxu0 %v1587
        %v1758 = vpop.f32.mrb[0].mxu0
        %v1759 = vadd.f32 %v1626, %v1758
        %v1760 = vpop.f32.mrb[0].mxu0
        %v1761 = vpop.f32.mrb[0].mxu0
        %v1762 = vadd.f32 %v1626, %v1761
        %v1763 = vpop.f32.mrb[0].mxu0
        %1764 = vdwg.mxu0
        %v1765 = vadd.f32 %v1759, %v1429
        %v1766 = vadd.f32 %v1762, %v1430
        %v1767 = vld [vmem:[%s9] sm:$0x1]
        %v1768 = vld [vmem:[%s10] sm:$0x1]
        %1769 = vadd.xlane.f32.xlu0 %v1765
        %v1770 = vpop.xlane.xlu0 %1769
        %1771 = vadd.xlane.f32.xlu0 %v1766
        %v1772 = vpop.xlane.xlu0 %1771
        %v1773 = vmul.f32 %v1770, %v1396
        %v1774 = vmul.f32 %v1772, %v1396
        %v1775 = vsub.f32 %v1765, %v1773
        %v1776 = vsub.f32 %v1766, %v1774
        %v1777 = vmul.f32 %v1775, %v1775
        %v1778 = vmul.f32 %v1776, %v1776
        %1779 = vadd.xlane.f32.xlu0 %v1777
        %v1780 = vpop.xlane.xlu0 %1779
        %1781 = vadd.xlane.f32.xlu0 %v1778
        %v1782 = vpop.xlane.xlu0 %1781
        %v1783 = vmul.f32 %v1780, %v1396
        %v1784 = vmul.f32 %v1782, %v1396
        %v1785 = vadd.f32 %v1783, 1e-06
        %v1786 = vadd.f32 %v1784, 1e-06
        %v1787 = vrsqrt.pop %v1785
        %v1788 = vrsqrt.pop %v1786
        %v1789 = vmul.f32 %v1775, %v1787
        %v1790 = vmul.f32 %v1776, %v1788
        %v1792 = vlaneseq
        %v1793 = vshrl.u32 %v1792, 7
        %v1794 = vsub.s32 0, %v1793
        %v1795 = vrot.slane %v1767, %v1794
        %v1797 = vmul.f32 %v1789, %v1795
        %v1798 = vmul.f32 %v1790, %v1795
        %v1800 = vlaneseq
        %v1801 = vshrl.u32 %v1800, 7
        %v1802 = vsub.s32 0, %v1801
        %v1803 = vrot.slane %v1768, %v1802
        %v1805 = vadd.f32 %v1797, %v1803
        %v1806 = vadd.f32 %v1798, %v1803
        %1807 = vst [vmem:[%s493] sm:$0xff] %v1805
        %1808 = vst [vmem:[%s493 + $0x8] sm:$0xff] %v1806
        %s1809 = sand.u32 %s279, 1
        %s1810 = scalar_lea.sflag [#allocation5], %s1809
        %s1811 = sand.u32 %s279, 1
        %s1812 = smul.addr %s1811, 16
        %s1813 = scalar_lea.vmem [#allocation12], %s1812
        %s1814 = sand.u32 %s305, 1
        %s1815 = scalar_lea.sflag [#allocation14], %s1814
        %s1816 = sand.u32 %s305, 1
        %s1817 = smul.addr %s1816, 64
        %s1818 = scalar_lea.vmem [#allocation13], %s1817
        // Predicated region
        $region85: #{tpu_custom_call.1} parent=63 // pred_check
          %p1819 = pneg %p289
        $region86: #{tpu_custom_call.1} parent=63 // pred_check_branch
          %1821 = sbr.rel (%p1819) target = $region88
        $region87: #{tpu_custom_call.1} parent=63 // pred_region
          %s1823 = ssub.s32 256, 256
          %1824 = vsyncadd %s1810, %s1823
          %s1825 = smul.addr %s35, 2
          %s1826 = smul.addr %s1825, 128
          %s1827 = scalar_lea.hbm %s11, %s1826
          %s1828 = sshll.u32 %s1813, 4
          %s1829 = int_to_ptr.vmem [resolvable:$true] %s1828
          %1834 = dma.vmem_to_hbm [thread:$0]  %s1829, 256, %s1827, %s1810, 128, 128, 8
        $region88: #{tpu_custom_call.1} parent=63 // pred_fallthru
          _
        // Predicated region
        $region89: #{tpu_custom_call.1} parent=63 // pred_check
          %p1835 = pneg %p315
        $region90: #{tpu_custom_call.1} parent=63 // pred_check_branch
          %1837 = sbr.rel (%p1835) target = $region92
        $region91: #{tpu_custom_call.1} parent=63 // pred_region
          %s1839 = ssub.s32 1024, 1024
          %1840 = vsyncadd %s1815, %s1839
          %s1841 = smul.addr %s35, 8
          %s1842 = smul.addr %s1841, 128
          %s1843 = scalar_lea.hbm %s12, %s1842
          %s1844 = sshll.u32 %s1818, 4
          %s1845 = int_to_ptr.vmem [resolvable:$true] %s1844
          %1850 = dma.vmem_to_hbm [thread:$0]  %s1845, 1024, %s1843, %s1815, 128, 128, 8
        $region92: #{tpu_custom_call.1} parent=63 // pred_fallthru
          _
      $region64: #{tpu_custom_call.1} parent=5 // pred_fallthru
        _
      %p1851 = scmp.le.s32.totalorder 2, %s30
      // Predicated region
      $region93: #{tpu_custom_call.1} parent=5 // pred_check
        %p1852 = pneg %p1851
      $region94: #{tpu_custom_call.1} parent=5 // pred_check_branch
        %1854 = sbr.rel (%p1852) target = $region96
      $region95: #{tpu_custom_call.1} parent=5 // pred_region
        %s1855 = ssub.s32 %s30, 2
        // Predicated region
        $region97: #{tpu_custom_call.1} parent=95 // pred_check
          %p1856 = pneg %p295
        $region98: #{tpu_custom_call.1} parent=95 // pred_check_branch
          %1858 = sbr.rel (%p1856) target = $region100
        $region99: #{tpu_custom_call.1} parent=95 // pred_region
          %s1859 = sand.u32 %s280, 1
          %s1860 = scalar_lea.sflag [#allocation5], %s1859
          %s1861 = sand.u32 %s280, 1
          %s1862 = smul.addr %s1861, 16
          %s1863 = scalar_lea.vmem [#allocation12], %s1862
          %1864 = dma.done %s1860, 256
        $region100: #{tpu_custom_call.1} parent=95 // pred_fallthru
          _
        // Predicated region
        $region101: #{tpu_custom_call.1} parent=95 // pred_check
          %p1865 = pneg %p321
        $region102: #{tpu_custom_call.1} parent=95 // pred_check_branch
          %1867 = sbr.rel (%p1865) target = $region104
        $region103: #{tpu_custom_call.1} parent=95 // pred_region
          %s1868 = sand.u32 %s306, 1
          %s1869 = scalar_lea.sflag [#allocation14], %s1868
          %s1870 = sand.u32 %s306, 1
          %s1871 = smul.addr %s1870, 64
          %s1872 = scalar_lea.vmem [#allocation13], %s1871
          %1873 = dma.done %s1869, 1024
        $region104: #{tpu_custom_call.1} parent=95 // pred_fallthru
          _
      $region96: #{tpu_custom_call.1} parent=5 // pred_fallthru
        _
    $region6: #{tpu_custom_call.1} parent=1 // loop_footer
      %s34 = sadd.s32 1, %s30
    $region7: #{tpu_custom_call.1} parent=1 // loop_footer_branch
      %29 = sbr.rel target = $region3
    $region8: #{tpu_custom_call.1} parent=1 // loop_exit
      _
    %1874 = vsyncpa [#allocation4], 1
    %s1875 = scalar_lea.sflag [#allocation4], 1
    %1876 = vsyncpa %s1875, 1
    %1877 = vsyncpa [#allocation7], 1
    %1878 = vsyncpa [#allocation10], 1
    %1879 = vsyncpa [#allocation5], 1
    %s1880 = scalar_lea.sflag [#allocation5], 1
    %1881 = vsyncpa %s1880, 1
    %1882 = vsyncpa [#allocation14], 1
    %s1883 = scalar_lea.sflag [#allocation14], 1
    %1884 = vsyncpa %s1883, 1

</llo_original>
